<compile_context>
chip_gen: v6e
topology: v6e:2x2x1
jax: 0.10.0
libtpu: 0.0.40
codegen_flags: <defaults>
</compile_context>

<pallas_src>
import functools

import jax
import jax.numpy as jnp
from jax.experimental import pallas as pl
from jax.experimental.pallas import tpu as pltpu

_SUBLANE = 8   # f32 sublane width (second-to-last dim granularity)


def _round_up(n, m):
    return ((n + m - 1) // m) * m


def mlp_kernel(x_ref, w1_ref, b1_ref, w2_ref, b2_ref, o_ref):
    # Fused fc1 -> ReLU -> fc2 -> ReLU on one batch tile. Both matmuls
    # accumulate in f32; the intermediate stays f32 regardless of weight dtype.
    x = x_ref[...]
    h = jnp.dot(x, w1_ref[...], preferred_element_type=jnp.float32) + b1_ref[...]
    h = jnp.maximum(h, 0.0)
    y = jnp.dot(h, w2_ref[...], preferred_element_type=jnp.float32) + b2_ref[...]
    y = jnp.maximum(y, 0.0)
    o_ref[...] = y.astype(o_ref.dtype)


@functools.partial(jax.jit, static_argnames=("block_batch", "min_pallas_batch"))
def mlp_forward(x, w1, b1, w2, b2, *, block_batch=512, min_pallas_batch=64):
    """relu(relu(x @ w1 + b1) @ w2 + b2), batch-tiled Pallas kernel (no feature padding)."""
    batch, obs_dim = x.shape
    hidden = w1.shape[1]
    dim_latent = w2.shape[1]
    out_dtype = x.dtype

    b1 = b1.reshape(1, hidden)
    b2 = b2.reshape(1, dim_latent)

    # Small-batch fallback: pallas_call fixed overhead exceeds the kernel work
    # at these tiny feature dims; let XLA's fused path handle it.
    if batch < min_pallas_batch:
        h = jnp.maximum(x @ w1 + b1, 0.0)
        return jnp.maximum(h @ w2 + b2, 0.0).astype(out_dtype)

    # Batch tile: as large as block_batch, but always split into >= 2 grid
    # steps so dimension_semantics=("parallel",) can shard the batch across
    # both TensorCores on v7x (v5e/v6e simply get a 2-step pipeline).
    batch_r = _round_up(batch, _SUBLANE)
    tb = min(block_batch, _round_up(pl.cdiv(batch_r, 2), _SUBLANE))
    batch_p = _round_up(batch, tb)

    # Pad the batch only when it doesn't divide into whole tiles.
    x_in = x if batch_p == batch else jnp.pad(x, ((0, batch_p - batch), (0, 0)))

    grid = (batch_p // tb,)
    out = pl.pallas_call(
        mlp_kernel,
        out_shape=jax.ShapeDtypeStruct((batch_p, dim_latent), out_dtype),
        grid=grid,
        in_specs=[
            # x streams over the batch; feature dim is the full (unpadded) extent.
            pl.BlockSpec((tb, obs_dim), lambda i: (i, 0)),
            # Weights / biases: full arrays, VMEM-resident (constant index_map).
            pl.BlockSpec((obs_dim, hidden), lambda i: (0, 0)),
            pl.BlockSpec((1, hidden), lambda i: (0, 0)),
            pl.BlockSpec((hidden, dim_latent), lambda i: (0, 0)),
            pl.BlockSpec((1, dim_latent), lambda i: (0, 0)),
        ],
        out_specs=pl.BlockSpec((tb, dim_latent), lambda i: (i, 0)),
        compiler_params=pltpu.CompilerParams(
            dimension_semantics=("parallel",),
        ),
    )(x_in, w1, b1, w2, b2)

    return out if batch_p == batch else out[:batch]


def init_mlp_params(key, obs_dim, dim_latent, hidden_dim=20, dtype=jnp.float32):
    """Deterministic init mimicking PyTorch nn.Linear default (uniform +/- 1/sqrt(fan_in))."""
    k1, k2, k3, k4 = jax.random.split(key, 4)
    lim1 = 1.0 / jnp.sqrt(obs_dim)
    lim2 = 1.0 / jnp.sqrt(hidden_dim)
    w1 = jax.random.uniform(k1, (obs_dim, hidden_dim), dtype, -lim1, lim1)
    b1 = jax.random.uniform(k2, (1, hidden_dim), dtype, -lim1, lim1)
    w2 = jax.random.uniform(k3, (hidden_dim, dim_latent), dtype, -lim2, lim2)
    b2 = jax.random.uniform(k4, (1, dim_latent), dtype, -lim2, lim2)
    return w1, b1, w2, b2


def _mlp_ref(x, w1, b1, w2, b2):
    return jnp.maximum(jnp.maximum(x @ w1 + b1, 0.0) @ w2 + b2, 0.0)


if __name__ == "__main__":
    obs_dim = 16
    dim_latent = 32

    key = jax.random.PRNGKey(0)
    kx, kp = jax.random.split(key)
    w1, b1, w2, b2 = init_mlp_params(kp, obs_dim, dim_latent)

    # 1) Multi-tile kernel path: batch divides evenly into 2 x 512-row tiles.
    batch = 1024
    x = jax.random.normal(kx, (batch, obs_dim), dtype=jnp.float32)
    out = mlp_forward(x, w1, b1, w2, b2)
    jax.block_until_ready(out)
    ref = _mlp_ref(x, w1, b1, w2, b2)
    assert out.shape == (batch, dim_latent)
    assert jnp.allclose(out, ref, atol=1e-5, rtol=1e-5)

    # 2) Kernel path with a non-tile-multiple batch (exercises the pad/slice).
    batch_odd = 300
    xo = jax.random.normal(kx, (batch_odd, obs_dim), dtype=jnp.float32)
    out_o = mlp_forward(xo, w1, b1, w2, b2)
    jax.block_until_ready(out_o)
    ref_o = _mlp_ref(xo, w1, b1, w2, b2)
    assert out_o.shape == (batch_odd, dim_latent)
    assert jnp.allclose(out_o, ref_o, atol=1e-5, rtol=1e-5)

    # 3) Small-batch fallback path (plain jnp; pallas overhead not worth it here).
    batch_small = 8
    xs = jax.random.normal(kx, (batch_small, obs_dim), dtype=jnp.float32)
    out_s = mlp_forward(xs, w1, b1, w2, b2)
    jax.block_until_ready(out_s)
    ref_s = _mlp_ref(xs, w1, b1, w2, b2)
    assert out_s.shape == (batch_small, dim_latent)
    assert jnp.allclose(out_s, ref_s, atol=1e-5, rtol=1e-5)

    print("KERNEL_OK")
</pallas_src>

<mosaic_0001>
module attributes {stable_mosaic.version = 11 : i64} {
  func.func @mlp_kernel(%arg0: i32, %arg1: memref<512x16xf32, #tpu.memory_space<vmem>>, %arg2: memref<16x20xf32, #tpu.memory_space<vmem>>, %arg3: memref<1x20xf32, #tpu.memory_space<vmem>>, %arg4: memref<20x32xf32, #tpu.memory_space<vmem>>, %arg5: memref<1x32xf32, #tpu.memory_space<vmem>>, %arg6: memref<512x32xf32, #tpu.memory_space<vmem>>) attributes {dimension_semantics = [#tpu.dimension_semantics<parallel>], iteration_bounds = array<i64: 2>, scalar_prefetch = 0 : i64, scratch_operands = 0 : i64, tpu.core_type = #tpu.core_type<tc>, window_params = [{transform_indices = @transform_0, window_bounds = array<i64: 512, 16>}, {pipeline_mode = #tpu.pipeline_mode<synchronous>, transform_indices = @transform_1, window_bounds = array<i64: 16, 20>}, {pipeline_mode = #tpu.pipeline_mode<synchronous>, transform_indices = @transform_2, window_bounds = array<i64: 1, 20>}, {pipeline_mode = #tpu.pipeline_mode<synchronous>, transform_indices = @transform_3, window_bounds = array<i64: 20, 32>}, {pipeline_mode = #tpu.pipeline_mode<synchronous>, transform_indices = @transform_4, window_bounds = array<i64: 1, 32>}, {transform_indices = @transform_5, window_bounds = array<i64: 512, 32>}]} {
    %c0 = arith.constant 0 : index
    %c0_0 = arith.constant 0 : index
    %0 = vector.load %arg1[%c0, %c0_0] : memref<512x16xf32, #tpu.memory_space<vmem>>, vector<512x16xf32>
    %c0_1 = arith.constant 0 : index
    %c0_2 = arith.constant 0 : index
    %1 = vector.load %arg2[%c0_1, %c0_2] : memref<16x20xf32, #tpu.memory_space<vmem>>, vector<16x20xf32>
    %cst = arith.constant dense<0.000000e+00> : vector<512x20xf32>
    %2 = tpu.matmul %0, %1, %cst {dimension_numbers = #tpu.dot_dimension_numbers<[1], [0], [0], [1], [0, 0, 1, 1], [], []>} : vector<512x16xf32>, vector<16x20xf32>, vector<512x20xf32> -> vector<512x20xf32>
    %c0_3 = arith.constant 0 : index
    %c0_4 = arith.constant 0 : index
    %3 = vector.load %arg3[%c0_3, %c0_4] : memref<1x20xf32, #tpu.memory_space<vmem>>, vector<1x20xf32>
    %4 = vector.broadcast %3 : vector<1x20xf32> to vector<512x20xf32>
    %5 = arith.addf %2, %4 : vector<512x20xf32>
    %cst_5 = arith.constant 0.000000e+00 : f32
    %6 = vector.broadcast %cst_5 : f32 to vector<512x20xf32>
    %7 = arith.maximumf %5, %6 : vector<512x20xf32>
    %c0_6 = arith.constant 0 : index
    %c0_7 = arith.constant 0 : index
    %8 = vector.load %arg4[%c0_6, %c0_7] : memref<20x32xf32, #tpu.memory_space<vmem>>, vector<20x32xf32>
    %cst_8 = arith.constant dense<0.000000e+00> : vector<512x32xf32>
    %9 = tpu.matmul %7, %8, %cst_8 {dimension_numbers = #tpu.dot_dimension_numbers<[1], [0], [0], [1], [0, 0, 1, 1], [], []>} : vector<512x20xf32>, vector<20x32xf32>, vector<512x32xf32> -> vector<512x32xf32>
    %c0_9 = arith.constant 0 : index
    %c0_10 = arith.constant 0 : index
    %10 = vector.load %arg5[%c0_9, %c0_10] : memref<1x32xf32, #tpu.memory_space<vmem>>, vector<1x32xf32>
    %11 = vector.broadcast %10 : vector<1x32xf32> to vector<512x32xf32>
    %12 = arith.addf %9, %11 : vector<512x32xf32>
    %cst_11 = arith.constant 0.000000e+00 : f32
    %13 = vector.broadcast %cst_11 : f32 to vector<512x32xf32>
    %14 = arith.maximumf %12, %13 : vector<512x32xf32>
    %c0_12 = arith.constant 0 : index
    %c0_13 = arith.constant 0 : index
    %15 = vector.load %arg6[%c0_12, %c0_13] : memref<512x32xf32, #tpu.memory_space<vmem>>, vector<512x32xf32>
    tpu.vector_store %arg6[%c0_12, %c0_13], %14 {strides = array<i32>} : memref<512x32xf32, #tpu.memory_space<vmem>>, vector<512x32xf32>,
    return
  }
  func.func @transform_0(%arg0: i32) -> (i32, i32) {
    %c0_i32 = arith.constant 0 : i32
    %c0_i32_0 = arith.constant 0 : i32
    return %arg0, %c0_i32 : i32, i32
  }
  func.func @transform_1(%arg0: i32) -> (i32, i32) {
    %c0_i32 = arith.constant 0 : i32
    %c0_i32_0 = arith.constant 0 : i32
    %c0_i32_1 = arith.constant 0 : i32
    return %c0_i32, %c0_i32_0 : i32, i32
  }
  func.func @transform_2(%arg0: i32) -> (i32, i32) {
    %c0_i32 = arith.constant 0 : i32
    %c0_i32_0 = arith.constant 0 : i32
    %c0_i32_1 = arith.constant 0 : i32
    return %c0_i32, %c0_i32_0 : i32, i32
  }
  func.func @transform_3(%arg0: i32) -> (i32, i32) {
    %c0_i32 = arith.constant 0 : i32
    %c0_i32_0 = arith.constant 0 : i32
    %c0_i32_1 = arith.constant 0 : i32
    return %c0_i32, %c0_i32_0 : i32, i32
  }
  func.func @transform_4(%arg0: i32) -> (i32, i32) {
    %c0_i32 = arith.constant 0 : i32
    %c0_i32_0 = arith.constant 0 : i32
    %c0_i32_1 = arith.constant 0 : i32
    return %c0_i32, %c0_i32_0 : i32, i32
  }
  func.func @transform_5(%arg0: i32) -> (i32, i32) {
    %c0_i32 = arith.constant 0 : i32
    %c0_i32_0 = arith.constant 0 : i32
    return %arg0, %c0_i32 : i32, i32
  }
}

</mosaic_0001>

<llo_original>
// kernel: mlp_forward.1
$region0: #{mlp_forward.1}
  #allocation0 [shape = 'u32[]', space=smem, size = 0x4, offset = 0x4, fixed_abs, tag = 'smem constant byte address 0x4 - core index']
  #allocation1 [shape = 'u32[144,128]{1,0:T(1,128)}', space=vmem, size = 0x12000, scoped, tag = 'internal scratch']
  %s0 = inlined_call_operand.vmem [shape: f32[1024,16], index: 0, kind: input, shape index: {}]
  %s1 = inlined_call_operand.vmem [shape: f32[16,20], index: 1, kind: input, shape index: {}]
  %s2 = inlined_call_operand.vmem [shape: f32[1,20], index: 2, kind: input, shape index: {}]
  %s3 = inlined_call_operand.vmem [shape: f32[20,32], index: 3, kind: input, shape index: {}]
  %s4 = inlined_call_operand.vmem [shape: f32[1,32], index: 4, kind: input, shape index: {}]
  %s5 = inlined_call_operand.vmem [shape: f32[1024,32], index: 5, kind: output, shape index: {}]
  %s6 = sld [smem:[#allocation0]]
  $region53: #{mlp_forward.1} parent=0
    _
  %s8 = ssub.s32 1, %s6
  %s9 = scalar_select 0, %s8, %s6
  loop: start=0, step=1, limit=4
  $region2: #{mlp_forward.1} parent=0 // loop_pre_header
    _
  $region3: #{mlp_forward.1} parent=0 // loop_header
    %s11 = sphi 0, %s15
    %p12 = scmp.ge.s32.totalorder %s11, 4
    %s21 = sphi 0, %s23
    %s24 = sphi 0, %s21
    %s25 = sphi 0, %s24
    %s41 = sphi 0, %s25
    %s45 = sphi 0, %s45
    %s47 = sphi 0, %s45
    %s48 = sphi 0, %s47
    %s62 = sphi 0, %s48
    %s66 = sphi 0, %s66
    %s68 = sphi 0, %s66
    %s69 = sphi 0, %s68
    %s83 = sphi 0, %s69
    %s87 = sphi 0, %s87
    %s89 = sphi 0, %s87
    %s90 = sphi 0, %s89
    %s104 = sphi 0, %s90
    %s108 = sphi 0, %s108
    %s110 = sphi 0, %s108
    %s111 = sphi 0, %s110
    %s125 = sphi 0, %s111
    %s131 = sphi 0, %s133
    %s134 = sphi 0, %s131
    %s135 = sphi 0, %s134
    %s151 = sphi 0, %s135
  $region4: #{mlp_forward.1} parent=0 // loop_header_branch
    %14 = sbr.rel (%p12) target = $region8
  $region5: #{mlp_forward.1} parent=0 // loop_body
    %s16 = ssub.s32 %s11, 1
    %s17 = ssub.s32 %s11, 2
    %s18 = sadd.s32 %s11, 1
    %s19 = ssub.s32 %s11, %s18
    %p20 = scmp.eq.s32.totalorder %s19, 0
    %s22 = sadd.s32 %s21, 1
    %s23 = scalar_select %p20, %s21, %s22
    %p26 = pneg %p20
    %p27 = scmp.eq.s32.totalorder %s11, 1
    %p28 = por %p26, %p27
    %p29 = scmp.ne.s32.totalorder %s21, %s24
    %p30 = scmp.eq.s32.totalorder %s11, 0
    %p31 = por %p29, %p30
    %p32 = scmp.ne.s32.totalorder %s21, %s24
    %p33 = scmp.eq.s32.totalorder %s16, 1
    %p34 = por %p32, %p33
    %p35 = scmp.ne.s32.totalorder %s24, %s25
    %p36 = scmp.eq.s32.totalorder %s16, 0
    %p37 = por %p35, %p36
    %p38 = scmp.ne.s32.totalorder %s24, %s25
    %p39 = scmp.eq.s32.totalorder %s17, 1
    %p40 = por %p38, %p39
    %p42 = scmp.ne.s32.totalorder %s25, %s41
    %p43 = scmp.eq.s32.totalorder %s17, 0
    %p44 = por %p42, %p43
    %s46 = sadd.s32 %s45, 1
    %p49 = scmp.eq.s32.totalorder %s11, 1
    %p50 = scmp.ne.s32.totalorder %s45, %s47
    %p51 = scmp.eq.s32.totalorder %s11, 0
    %p52 = por %p50, %p51
    %p53 = scmp.ne.s32.totalorder %s45, %s47
    %p54 = scmp.eq.s32.totalorder %s16, 1
    %p55 = por %p53, %p54
    %p56 = scmp.ne.s32.totalorder %s47, %s48
    %p57 = scmp.eq.s32.totalorder %s16, 0
    %p58 = por %p56, %p57
    %p59 = scmp.ne.s32.totalorder %s47, %s48
    %p60 = scmp.eq.s32.totalorder %s17, 1
    %p61 = por %p59, %p60
    %p63 = scmp.ne.s32.totalorder %s48, %s62
    %p64 = scmp.eq.s32.totalorder %s17, 0
    %p65 = por %p63, %p64
    %s67 = sadd.s32 %s66, 1
    %p70 = scmp.eq.s32.totalorder %s11, 1
    %p71 = scmp.ne.s32.totalorder %s66, %s68
    %p72 = scmp.eq.s32.totalorder %s11, 0
    %p73 = por %p71, %p72
    %p74 = scmp.ne.s32.totalorder %s66, %s68
    %p75 = scmp.eq.s32.totalorder %s16, 1
    %p76 = por %p74, %p75
    %p77 = scmp.ne.s32.totalorder %s68, %s69
    %p78 = scmp.eq.s32.totalorder %s16, 0
    %p79 = por %p77, %p78
    %p80 = scmp.ne.s32.totalorder %s68, %s69
    %p81 = scmp.eq.s32.totalorder %s17, 1
    %p82 = por %p80, %p81
    %p84 = scmp.ne.s32.totalorder %s69, %s83
    %p85 = scmp.eq.s32.totalorder %s17, 0
    %p86 = por %p84, %p85
    %s88 = sadd.s32 %s87, 1
    %p91 = scmp.eq.s32.totalorder %s11, 1
    %p92 = scmp.ne.s32.totalorder %s87, %s89
    %p93 = scmp.eq.s32.totalorder %s11, 0
    %p94 = por %p92, %p93
    %p95 = scmp.ne.s32.totalorder %s87, %s89
    %p96 = scmp.eq.s32.totalorder %s16, 1
    %p97 = por %p95, %p96
    %p98 = scmp.ne.s32.totalorder %s89, %s90
    %p99 = scmp.eq.s32.totalorder %s16, 0
    %p100 = por %p98, %p99
    %p101 = scmp.ne.s32.totalorder %s89, %s90
    %p102 = scmp.eq.s32.totalorder %s17, 1
    %p103 = por %p101, %p102
    %p105 = scmp.ne.s32.totalorder %s90, %s104
    %p106 = scmp.eq.s32.totalorder %s17, 0
    %p107 = por %p105, %p106
    %s109 = sadd.s32 %s108, 1
    %p112 = scmp.eq.s32.totalorder %s11, 1
    %p113 = scmp.ne.s32.totalorder %s108, %s110
    %p114 = scmp.eq.s32.totalorder %s11, 0
    %p115 = por %p113, %p114
    %p116 = scmp.ne.s32.totalorder %s108, %s110
    %p117 = scmp.eq.s32.totalorder %s16, 1
    %p118 = por %p116, %p117
    %p119 = scmp.ne.s32.totalorder %s110, %s111
    %p120 = scmp.eq.s32.totalorder %s16, 0
    %p121 = por %p119, %p120
    %p122 = scmp.ne.s32.totalorder %s110, %s111
    %p123 = scmp.eq.s32.totalorder %s17, 1
    %p124 = por %p122, %p123
    %p126 = scmp.ne.s32.totalorder %s111, %s125
    %p127 = scmp.eq.s32.totalorder %s17, 0
    %p128 = por %p126, %p127
    %s129 = ssub.s32 %s11, %s18
    %p130 = scmp.eq.s32.totalorder %s129, 0
    %s132 = sadd.s32 %s131, 1
    %s133 = scalar_select %p130, %s131, %s132
    %p136 = pneg %p130
    %p137 = scmp.eq.s32.totalorder %s11, 1
    %p138 = por %p136, %p137
    %p139 = scmp.ne.s32.totalorder %s131, %s134
    %p140 = scmp.eq.s32.totalorder %s11, 0
    %p141 = por %p139, %p140
    %p142 = scmp.ne.s32.totalorder %s131, %s134
    %p143 = scmp.eq.s32.totalorder %s16, 1
    %p144 = por %p142, %p143
    %p145 = scmp.ne.s32.totalorder %s134, %s135
    %p146 = scmp.eq.s32.totalorder %s16, 0
    %p147 = por %p145, %p146
    %p148 = scmp.ne.s32.totalorder %s134, %s135
    %p149 = scmp.eq.s32.totalorder %s17, 1
    %p150 = por %p148, %p149
    %p152 = scmp.ne.s32.totalorder %s135, %s151
    %p153 = scmp.eq.s32.totalorder %s17, 0
    %p154 = por %p152, %p153
    %p155 = scmp.le.s32.totalorder 1, %s11
    %p156 = scmp.lt.s32.totalorder %s11, 3
    %p157 = pnand %p155, %p156
    %p158 = pneg %p157
    // Predicated region
    $region9: #{mlp_forward.1} parent=5 // pred_check
      _
    $region10: #{mlp_forward.1} parent=5 // pred_check_branch
      %160 = sbr.rel (%p157) target = $region12
    $region11: #{mlp_forward.1} parent=5 // pred_region
      %s161 = ssub.s32 %s11, 1
      // Predicated region
      $region13: #{mlp_forward.1} parent=11 // pred_check
        %p162 = pneg %p58
      $region14: #{mlp_forward.1} parent=11 // pred_check_branch
        %164 = sbr.rel (%p162) target = $region16
      $region15: #{mlp_forward.1} parent=11 // pred_region
        _
      $region16: #{mlp_forward.1} parent=11 // pred_fallthru
        _
      // Predicated region
      $region17: #{mlp_forward.1} parent=11 // pred_check
        %p165 = pneg %p79
      $region18: #{mlp_forward.1} parent=11 // pred_check_branch
        %167 = sbr.rel (%p165) target = $region20
      $region19: #{mlp_forward.1} parent=11 // pred_region
        _
      $region20: #{mlp_forward.1} parent=11 // pred_fallthru
        _
      // Predicated region
      $region21: #{mlp_forward.1} parent=11 // pred_check
        %p168 = pneg %p100
      $region22: #{mlp_forward.1} parent=11 // pred_check_branch
        %170 = sbr.rel (%p168) target = $region24
      $region23: #{mlp_forward.1} parent=11 // pred_region
        _
      $region24: #{mlp_forward.1} parent=11 // pred_fallthru
        _
      // Predicated region
      $region25: #{mlp_forward.1} parent=11 // pred_check
        %p171 = pneg %p121
      $region26: #{mlp_forward.1} parent=11 // pred_check_branch
        %173 = sbr.rel (%p171) target = $region28
      $region27: #{mlp_forward.1} parent=11 // pred_region
        _
      $region28: #{mlp_forward.1} parent=11 // pred_fallthru
        _
    $region12: #{mlp_forward.1} parent=5 // pred_fallthru
      _
    %p174 = scmp.lt.s32.totalorder %s11, 2
    // Predicated region
    $region29: #{mlp_forward.1} parent=5 // pred_check
      %p175 = pneg %p174
    $region30: #{mlp_forward.1} parent=5 // pred_check_branch
      %177 = sbr.rel (%p175) target = $region32
    $region31: #{mlp_forward.1} parent=5 // pred_region
      // Predicated region
      $region33: #{mlp_forward.1} parent=31 // pred_check
        %p178 = pneg %p31
      $region34: #{mlp_forward.1} parent=31 // pred_check_branch
        %180 = sbr.rel (%p178) target = $region36
      $region35: #{mlp_forward.1} parent=31 // pred_region
        %s181 = smul.u32 64, %s11
        %p182 = scmp.lt.s32.totalorder %s181, 127
        %s183 = scalar_select %p182, %s181, 127
        %s184 = smul.addr %s183, 8
        %s185 = scalar_lea.vmem %s0, %s184
        %s186 = smul.u32 64, %s11
      $region36: #{mlp_forward.1} parent=31 // pred_fallthru
        _
    $region32: #{mlp_forward.1} parent=5 // pred_fallthru
      _
    %p187 = scmp.le.s32.totalorder 1, %s11
    %p188 = scmp.lt.s32.totalorder %s11, 3
    %p189 = pnand %p187, %p188
    %p190 = pneg %p189
    // Predicated region
    $region37: #{mlp_forward.1} parent=5 // pred_check
      _
    $region38: #{mlp_forward.1} parent=5 // pred_check_branch
      %192 = sbr.rel (%p189) target = $region40
    $region39: #{mlp_forward.1} parent=5 // pred_region
      %s193 = ssub.s32 %s11, 1
      %s194 = smul.u32 64, %s16
      %p195 = scmp.lt.s32.totalorder %s194, 127
      %s196 = scalar_select %p195, %s194, 127
      %s197 = smul.addr %s196, 8
      %s198 = scalar_lea.vmem %s0, %s197
      %p199 = pneg %p37
      %p200 = pneg %p34
      %p201 = pneg %p58
      %p202 = pneg %p55
      %p203 = pneg %p79
      %p204 = pneg %p76
      %p205 = pneg %p100
      %p206 = pneg %p97
      %p207 = pneg %p121
      %p208 = pneg %p118
      %p209 = pneg %p147
      %p210 = pneg %p144
      %s211 = smul.u32 64, %s16
      %p212 = scmp.lt.s32.totalorder %s211, 127
      %s213 = scalar_select %p212, %s211, 127
      %s214 = smul.addr %s213, 8
      %s215 = scalar_lea.vmem %s5, %s214
      %s216 = smul.u32 64, %s16
      %p217 = scmp.lt.s32.totalorder %s216, 127
      %s218 = scalar_select %p217, %s216, 127
      %s219 = smul.addr %s218, 8
      %s220 = scalar_lea.vmem %s0, %s219
      %s221 = smul.u32 64, %s16
      %s222 = smul.u32 64, %s16
      %p223 = scmp.lt.s32.totalorder %s222, 127
      %s224 = scalar_select %p223, %s222, 127
      %s225 = smul.addr %s224, 8
      %s226 = scalar_lea.vmem %s5, %s225
      %s227 = smul.u32 64, %s16
      %v228 = vld [vmem:[%s220] sm:$0xff]
      %v229 = vld [vmem:[%s220 + $0x8] sm:$0xff]
      %v230 = vld [vmem:[%s220 + $0x10] sm:$0xff]
      %v231 = vld [vmem:[%s220 + $0x18] sm:$0xff]
      %v232 = vld [vmem:[%s220 + $0x20] sm:$0xff]
      %v233 = vld [vmem:[%s220 + $0x28] sm:$0xff]
      %v234 = vld [vmem:[%s220 + $0x30] sm:$0xff]
      %v235 = vld [vmem:[%s220 + $0x38] sm:$0xff]
      %v236 = vld [vmem:[%s220 + $0x40] sm:$0xff]
      %v237 = vld [vmem:[%s220 + $0x48] sm:$0xff]
      %v238 = vld [vmem:[%s220 + $0x50] sm:$0xff]
      %v239 = vld [vmem:[%s220 + $0x58] sm:$0xff]
      %v240 = vld [vmem:[%s220 + $0x60] sm:$0xff]
      %v241 = vld [vmem:[%s220 + $0x68] sm:$0xff]
      %v242 = vld [vmem:[%s220 + $0x70] sm:$0xff]
      %v243 = vld [vmem:[%s220 + $0x78] sm:$0xff]
      %v244 = vld [vmem:[%s220 + $0x80] sm:$0xff]
      %v245 = vld [vmem:[%s220 + $0x88] sm:$0xff]
      %v246 = vld [vmem:[%s220 + $0x90] sm:$0xff]
      %v247 = vld [vmem:[%s220 + $0x98] sm:$0xff]
      %v248 = vld [vmem:[%s220 + $0xa0] sm:$0xff]
      %v249 = vld [vmem:[%s220 + $0xa8] sm:$0xff]
      %v250 = vld [vmem:[%s220 + $0xb0] sm:$0xff]
      %v251 = vld [vmem:[%s220 + $0xb8] sm:$0xff]
      %v252 = vld [vmem:[%s220 + $0xc0] sm:$0xff]
      %v253 = vld [vmem:[%s220 + $0xc8] sm:$0xff]
      %v254 = vld [vmem:[%s220 + $0xd0] sm:$0xff]
      %v255 = vld [vmem:[%s220 + $0xd8] sm:$0xff]
      %v256 = vld [vmem:[%s220 + $0xe0] sm:$0xff]
      %v257 = vld [vmem:[%s220 + $0xe8] sm:$0xff]
      %v258 = vld [vmem:[%s220 + $0xf0] sm:$0xff]
      %v259 = vld [vmem:[%s220 + $0xf8] sm:$0xff]
      %v260 = vld [vmem:[%s220 + $0x100] sm:$0xff]
      %v261 = vld [vmem:[%s220 + $0x108] sm:$0xff]
      %v262 = vld [vmem:[%s220 + $0x110] sm:$0xff]
      %v263 = vld [vmem:[%s220 + $0x118] sm:$0xff]
      %v264 = vld [vmem:[%s220 + $0x120] sm:$0xff]
      %v265 = vld [vmem:[%s220 + $0x128] sm:$0xff]
      %v266 = vld [vmem:[%s220 + $0x130] sm:$0xff]
      %v267 = vld [vmem:[%s220 + $0x138] sm:$0xff]
      %v268 = vld [vmem:[%s220 + $0x140] sm:$0xff]
      %v269 = vld [vmem:[%s220 + $0x148] sm:$0xff]
      %v270 = vld [vmem:[%s220 + $0x150] sm:$0xff]
      %v271 = vld [vmem:[%s220 + $0x158] sm:$0xff]
      %v272 = vld [vmem:[%s220 + $0x160] sm:$0xff]
      %v273 = vld [vmem:[%s220 + $0x168] sm:$0xff]
      %v274 = vld [vmem:[%s220 + $0x170] sm:$0xff]
      %v275 = vld [vmem:[%s220 + $0x178] sm:$0xff]
      %v276 = vld [vmem:[%s220 + $0x180] sm:$0xff]
      %v277 = vld [vmem:[%s220 + $0x188] sm:$0xff]
      %v278 = vld [vmem:[%s220 + $0x190] sm:$0xff]
      %v279 = vld [vmem:[%s220 + $0x198] sm:$0xff]
      %v280 = vld [vmem:[%s220 + $0x1a0] sm:$0xff]
      %v281 = vld [vmem:[%s220 + $0x1a8] sm:$0xff]
      %v282 = vld [vmem:[%s220 + $0x1b0] sm:$0xff]
      %v283 = vld [vmem:[%s220 + $0x1b8] sm:$0xff]
      %v284 = vld [vmem:[%s220 + $0x1c0] sm:$0xff]
      %v285 = vld [vmem:[%s220 + $0x1c8] sm:$0xff]
      %v286 = vld [vmem:[%s220 + $0x1d0] sm:$0xff]
      %v287 = vld [vmem:[%s220 + $0x1d8] sm:$0xff]
      %v288 = vld [vmem:[%s220 + $0x1e0] sm:$0xff]
      %v289 = vld [vmem:[%s220 + $0x1e8] sm:$0xff]
      %v290 = vld [vmem:[%s220 + $0x1f0] sm:$0xff]
      %v291 = vld [vmem:[%s220 + $0x1f8] sm:$0xff]
      %v292 = vld [vmem:[%s1] sm:$0xff]
      %v293 = vld [vmem:[%s1 + $0x8] sm:$0xff]
      %v294 = vld [vmem:[%s2] sm:$0x1]
      %v296 = vlaneseq
      %v297 = vshrl.u32 %v296, 7
      %v298 = vsub.s32 0, %v297
      %v299 = vrot.slane %v294, %v298
      %vm301 = vcmask 130048
      %v303 = vsel %vm301, %v228, 0
      %v306 = vsel %vm301, %v229, 0
      %v309 = vsel %vm301, %v230, 0
      %v312 = vsel %vm301, %v231, 0
      %v315 = vsel %vm301, %v232, 0
      %v318 = vsel %vm301, %v233, 0
      %v321 = vsel %vm301, %v234, 0
      %v324 = vsel %vm301, %v235, 0
      %v327 = vsel %vm301, %v236, 0
      %v330 = vsel %vm301, %v237, 0
      %v333 = vsel %vm301, %v238, 0
      %v336 = vsel %vm301, %v239, 0
      %v339 = vsel %vm301, %v240, 0
      %v342 = vsel %vm301, %v241, 0
      %v345 = vsel %vm301, %v242, 0
      %v348 = vsel %vm301, %v243, 0
      %v351 = vsel %vm301, %v244, 0
      %v354 = vsel %vm301, %v245, 0
      %v357 = vsel %vm301, %v246, 0
      %v360 = vsel %vm301, %v247, 0
      %v363 = vsel %vm301, %v248, 0
      %v366 = vsel %vm301, %v249, 0
      %v369 = vsel %vm301, %v250, 0
      %v372 = vsel %vm301, %v251, 0
      %v375 = vsel %vm301, %v252, 0
      %v378 = vsel %vm301, %v253, 0
      %v381 = vsel %vm301, %v254, 0
      %v384 = vsel %vm301, %v255, 0
      %v387 = vsel %vm301, %v256, 0
      %v390 = vsel %vm301, %v257, 0
      %v393 = vsel %vm301, %v258, 0
      %v396 = vsel %vm301, %v259, 0
      %v399 = vsel %vm301, %v260, 0
      %v402 = vsel %vm301, %v261, 0
      %v405 = vsel %vm301, %v262, 0
      %v408 = vsel %vm301, %v263, 0
      %v411 = vsel %vm301, %v264, 0
      %v414 = vsel %vm301, %v265, 0
      %v417 = vsel %vm301, %v266, 0
      %v420 = vsel %vm301, %v267, 0
      %v423 = vsel %vm301, %v268, 0
      %v426 = vsel %vm301, %v269, 0
      %v429 = vsel %vm301, %v270, 0
      %v432 = vsel %vm301, %v271, 0
      %v435 = vsel %vm301, %v272, 0
      %v438 = vsel %vm301, %v273, 0
      %v441 = vsel %vm301, %v274, 0
      %v444 = vsel %vm301, %v275, 0
      %v447 = vsel %vm301, %v276, 0
      %v450 = vsel %vm301, %v277, 0
      %v453 = vsel %vm301, %v278, 0
      %v456 = vsel %vm301, %v279, 0
      %v459 = vsel %vm301, %v280, 0
      %v462 = vsel %vm301, %v281, 0
      %v465 = vsel %vm301, %v282, 0
      %v468 = vsel %vm301, %v283, 0
      %v471 = vsel %vm301, %v284, 0
      %v474 = vsel %vm301, %v285, 0
      %v477 = vsel %vm301, %v286, 0
      %v480 = vsel %vm301, %v287, 0
      %v483 = vsel %vm301, %v288, 0
      %v486 = vsel %vm301, %v289, 0
      %v489 = vsel %vm301, %v290, 0
      %v492 = vsel %vm301, %v291, 0
      %494 = vmatprep.subr.mxu0 0.0
      %495 = vmatpush1.msra.mxu0 0.0
      %496 = vmatprep.subr.mxu0 0.0
      %497 = vmatpush1.msra.mxu0 0.0
      %498 = vmatprep.subr.mxu0 0.0
      %499 = vmatpush1.msra.mxu0 0.0
      %500 = vmatprep.subr.mxu0 0.0
      %501 = vmatpush1.msra.mxu0 0.0
      %502 = vmatprep.subr.mxu0 0.0
      %503 = vmatpush1.msra.mxu0 0.0
      %504 = vmatprep.subr.mxu0 0.0
      %505 = vmatpush1.msra.mxu0 0.0
      %506 = vmatprep.subr.mxu0 0.0
      %507 = vmatpush1.msra.mxu0 0.0
      %508 = vmatprep.subr.mxu0 0.0
      %509 = vmatpush1.msra.mxu0 0.0
      %510 = vmatprep.subr.mxu0 0.0
      %511 = vmatpush1.msra.mxu0 0.0
      %512 = vmatprep.subr.mxu0 0.0
      %513 = vmatpush1.msra.mxu0 0.0
      %514 = vmatprep.subr.mxu0 0.0
      %515 = vmatpush1.msra.mxu0 0.0
      %516 = vmatprep.subr.mxu0 0.0
      %517 = vmatpush1.msra.mxu0 0.0
      %518 = vmatprep.subr.mxu0 0.0
      %519 = vmatpush1.msra.mxu0 0.0
      %520 = vmatprep.subr.mxu0 0.0
      %521 = vmatpush1.msra.mxu0 0.0
      %522 = vmatprep.subr.mxu0 0.0
      %523 = vmatpush1.msra.mxu0 %v293
      %524 = vmatprep.subr.mxu0 0.0
      %525 = vmatpush1.msra.mxu0 %v292
      %526 = vmatprep.subr.mxu0 0.0
      %527 = vmatpush2.msra.mxu0 0.0
      %528 = vmatprep.subr.mxu0 0.0
      %529 = vmatpush2.msra.mxu0 0.0
      %530 = vmatprep.subr.mxu0 0.0
      %531 = vmatpush2.msra.mxu0 0.0
      %532 = vmatprep.subr.mxu0 0.0
      %533 = vmatpush2.msra.mxu0 0.0
      %534 = vmatprep.subr.mxu0 0.0
      %535 = vmatpush2.msra.mxu0 0.0
      %536 = vmatprep.subr.mxu0 0.0
      %537 = vmatpush2.msra.mxu0 0.0
      %538 = vmatprep.subr.mxu0 0.0
      %539 = vmatpush2.msra.mxu0 0.0
      %540 = vmatprep.subr.mxu0 0.0
      %541 = vmatpush2.msra.mxu0 0.0
      %542 = vmatprep.subr.mxu0 0.0
      %543 = vmatpush2.msra.mxu0 0.0
      %544 = vmatprep.subr.mxu0 0.0
      %545 = vmatpush2.msra.mxu0 0.0
      %546 = vmatprep.subr.mxu0 0.0
      %547 = vmatpush2.msra.mxu0 0.0
      %548 = vmatprep.subr.mxu0 0.0
      %549 = vmatpush2.msra.mxu0 0.0
      %550 = vmatprep.subr.mxu0 0.0
      %551 = vmatpush2.msra.mxu0 0.0
      %552 = vmatprep.subr.mxu0 0.0
      %553 = vmatpush2.msra.mxu0 0.0
      %554 = vmatprep.subr.mxu0 0.0
      %555 = vmatpush2.msra.mxu0 0.0
      %556 = vmatprep.subr.mxu0 0.0
      %557 = vmatpush2.msra.mxu0 0.0
      %558 = vmatprep.mubr.f32.mxu0 0.0
      %559 = vmatmul.mubr.f32.gmra.mxu0 %v303
      %v560 = vpop.f32.mrf.mxu0
      %v561 = vadd.f32 %v299, %v560
      %v562 = vpop.f32.mrf.mxu0
      %563 = vmatprep.mubr.f32.mxu0 0.0
      %564 = vmatmul.mubr.f32.gmra.mxu0 %v306
      %v565 = vpop.f32.mrf.mxu0
      %v566 = vadd.f32 %v299, %v565
      %v567 = vpop.f32.mrf.mxu0
      %568 = vmatprep.mubr.f32.mxu0 0.0
      %569 = vmatmul.mubr.f32.gmra.mxu0 %v309
      %v570 = vpop.f32.mrf.mxu0
      %v571 = vadd.f32 %v299, %v570
      %v572 = vpop.f32.mrf.mxu0
      %573 = vmatprep.mubr.f32.mxu0 0.0
      %574 = vmatmul.mubr.f32.gmra.mxu0 %v312
      %v575 = vpop.f32.mrf.mxu0
      %v576 = vadd.f32 %v299, %v575
      %v577 = vpop.f32.mrf.mxu0
      %578 = vmatprep.mubr.f32.mxu0 0.0
      %579 = vmatmul.mubr.f32.gmra.mxu0 %v315
      %v580 = vpop.f32.mrf.mxu0
      %v581 = vadd.f32 %v299, %v580
      %v582 = vpop.f32.mrf.mxu0
      %583 = vmatprep.mubr.f32.mxu0 0.0
      %584 = vmatmul.mubr.f32.gmra.mxu0 %v318
      %v585 = vpop.f32.mrf.mxu0
      %v586 = vadd.f32 %v299, %v585
      %v587 = vpop.f32.mrf.mxu0
      %588 = vmatprep.mubr.f32.mxu0 0.0
      %589 = vmatmul.mubr.f32.gmra.mxu0 %v321
      %v590 = vpop.f32.mrf.mxu0
      %v591 = vadd.f32 %v299, %v590
      %v592 = vpop.f32.mrf.mxu0
      %593 = vmatprep.mubr.f32.mxu0 0.0
      %594 = vmatmul.mubr.f32.gmra.mxu0 %v324
      %v595 = vpop.f32.mrf.mxu0
      %v596 = vadd.f32 %v299, %v595
      %v597 = vpop.f32.mrf.mxu0
      %598 = vmatprep.mubr.f32.mxu0 0.0
      %599 = vmatmul.mubr.f32.gmra.mxu0 %v327
      %v600 = vpop.f32.mrf.mxu0
      %v601 = vadd.f32 %v299, %v600
      %v602 = vpop.f32.mrf.mxu0
      %603 = vmatprep.mubr.f32.mxu0 0.0
      %604 = vmatmul.mubr.f32.gmra.mxu0 %v330
      %v605 = vpop.f32.mrf.mxu0
      %v606 = vadd.f32 %v299, %v605
      %v607 = vpop.f32.mrf.mxu0
      %608 = vmatprep.mubr.f32.mxu0 0.0
      %609 = vmatmul.mubr.f32.gmra.mxu0 %v333
      %v610 = vpop.f32.mrf.mxu0
      %v611 = vadd.f32 %v299, %v610
      %v612 = vpop.f32.mrf.mxu0
      %613 = vmatprep.mubr.f32.mxu0 0.0
      %614 = vmatmul.mubr.f32.gmra.mxu0 %v336
      %v615 = vpop.f32.mrf.mxu0
      %v616 = vadd.f32 %v299, %v615
      %v617 = vpop.f32.mrf.mxu0
      %618 = vmatprep.mubr.f32.mxu0 0.0
      %619 = vmatmul.mubr.f32.gmra.mxu0 %v339
      %v620 = vpop.f32.mrf.mxu0
      %v621 = vadd.f32 %v299, %v620
      %v622 = vpop.f32.mrf.mxu0
      %623 = vmatprep.mubr.f32.mxu0 0.0
      %624 = vmatmul.mubr.f32.gmra.mxu0 %v342
      %v625 = vpop.f32.mrf.mxu0
      %v626 = vadd.f32 %v299, %v625
      %v627 = vpop.f32.mrf.mxu0
      %628 = vmatprep.mubr.f32.mxu0 0.0
      %629 = vmatmul.mubr.f32.gmra.mxu0 %v345
      %v630 = vpop.f32.mrf.mxu0
      %v631 = vadd.f32 %v299, %v630
      %v632 = vpop.f32.mrf.mxu0
      %633 = vmatprep.mubr.f32.mxu0 0.0
      %634 = vmatmul.mubr.f32.gmra.mxu0 %v348
      %v635 = vpop.f32.mrf.mxu0
      %v636 = vadd.f32 %v299, %v635
      %v637 = vpop.f32.mrf.mxu0
      %638 = vmatprep.mubr.f32.mxu0 0.0
      %639 = vmatmul.mubr.f32.gmra.mxu0 %v351
      %v640 = vpop.f32.mrf.mxu0
      %v641 = vadd.f32 %v299, %v640
      %v642 = vpop.f32.mrf.mxu0
      %643 = vmatprep.mubr.f32.mxu0 0.0
      %644 = vmatmul.mubr.f32.gmra.mxu0 %v354
      %v645 = vpop.f32.mrf.mxu0
      %v646 = vadd.f32 %v299, %v645
      %v647 = vpop.f32.mrf.mxu0
      %648 = vmatprep.mubr.f32.mxu0 0.0
      %649 = vmatmul.mubr.f32.gmra.mxu0 %v357
      %v650 = vpop.f32.mrf.mxu0
      %v651 = vadd.f32 %v299, %v650
      %v652 = vpop.f32.mrf.mxu0
      %653 = vmatprep.mubr.f32.mxu0 0.0
      %654 = vmatmul.mubr.f32.gmra.mxu0 %v360
      %v655 = vpop.f32.mrf.mxu0
      %v656 = vadd.f32 %v299, %v655
      %v657 = vpop.f32.mrf.mxu0
      %658 = vmatprep.mubr.f32.mxu0 0.0
      %659 = vmatmul.mubr.f32.gmra.mxu0 %v363
      %v660 = vpop.f32.mrf.mxu0
      %v661 = vadd.f32 %v299, %v660
      %v662 = vpop.f32.mrf.mxu0
      %663 = vmatprep.mubr.f32.mxu0 0.0
      %664 = vmatmul.mubr.f32.gmra.mxu0 %v366
      %v665 = vpop.f32.mrf.mxu0
      %v666 = vadd.f32 %v299, %v665
      %v667 = vpop.f32.mrf.mxu0
      %668 = vmatprep.mubr.f32.mxu0 0.0
      %669 = vmatmul.mubr.f32.gmra.mxu0 %v369
      %v670 = vpop.f32.mrf.mxu0
      %v671 = vadd.f32 %v299, %v670
      %v672 = vpop.f32.mrf.mxu0
      %673 = vmatprep.mubr.f32.mxu0 0.0
      %674 = vmatmul.mubr.f32.gmra.mxu0 %v372
      %v675 = vpop.f32.mrf.mxu0
      %v676 = vadd.f32 %v299, %v675
      %v677 = vpop.f32.mrf.mxu0
      %678 = vmatprep.mubr.f32.mxu0 0.0
      %679 = vmatmul.mubr.f32.gmra.mxu0 %v375
      %v680 = vpop.f32.mrf.mxu0
      %v681 = vadd.f32 %v299, %v680
      %v682 = vpop.f32.mrf.mxu0
      %683 = vmatprep.mubr.f32.mxu0 0.0
      %684 = vmatmul.mubr.f32.gmra.mxu0 %v378
      %v685 = vpop.f32.mrf.mxu0
      %v686 = vadd.f32 %v299, %v685
      %v687 = vpop.f32.mrf.mxu0
      %688 = vmatprep.mubr.f32.mxu0 0.0
      %689 = vmatmul.mubr.f32.gmra.mxu0 %v381
      %v690 = vpop.f32.mrf.mxu0
      %v691 = vadd.f32 %v299, %v690
      %v692 = vpop.f32.mrf.mxu0
      %693 = vmatprep.mubr.f32.mxu0 0.0
      %694 = vmatmul.mubr.f32.gmra.mxu0 %v384
      %v695 = vpop.f32.mrf.mxu0
      %v696 = vadd.f32 %v299, %v695
      %v697 = vpop.f32.mrf.mxu0
      %698 = vmatprep.mubr.f32.mxu0 0.0
      %699 = vmatmul.mubr.f32.gmra.mxu0 %v387
      %v700 = vpop.f32.mrf.mxu0
      %v701 = vadd.f32 %v299, %v700
      %v702 = vpop.f32.mrf.mxu0
      %703 = vmatprep.mubr.f32.mxu0 0.0
      %704 = vmatmul.mubr.f32.gmra.mxu0 %v390
      %v705 = vpop.f32.mrf.mxu0
      %v706 = vadd.f32 %v299, %v705
      %v707 = vpop.f32.mrf.mxu0
      %708 = vmatprep.mubr.f32.mxu0 0.0
      %709 = vmatmul.mubr.f32.gmra.mxu0 %v393
      %v710 = vpop.f32.mrf.mxu0
      %v711 = vadd.f32 %v299, %v710
      %v712 = vpop.f32.mrf.mxu0
      %713 = vmatprep.mubr.f32.mxu0 0.0
      %714 = vmatmul.mubr.f32.gmra.mxu0 %v396
      %v715 = vpop.f32.mrf.mxu0
      %v716 = vadd.f32 %v299, %v715
      %v717 = vpop.f32.mrf.mxu0
      %718 = vmatprep.mubr.f32.mxu0 0.0
      %719 = vmatmul.mubr.f32.gmra.mxu0 %v399
      %v720 = vpop.f32.mrf.mxu0
      %v721 = vadd.f32 %v299, %v720
      %v722 = vpop.f32.mrf.mxu0
      %723 = vmatprep.mubr.f32.mxu0 0.0
      %724 = vmatmul.mubr.f32.gmra.mxu0 %v402
      %v725 = vpop.f32.mrf.mxu0
      %v726 = vadd.f32 %v299, %v725
      %v727 = vpop.f32.mrf.mxu0
      %728 = vmatprep.mubr.f32.mxu0 0.0
      %729 = vmatmul.mubr.f32.gmra.mxu0 %v405
      %v730 = vpop.f32.mrf.mxu0
      %v731 = vadd.f32 %v299, %v730
      %v732 = vpop.f32.mrf.mxu0
      %733 = vmatprep.mubr.f32.mxu0 0.0
      %734 = vmatmul.mubr.f32.gmra.mxu0 %v408
      %v735 = vpop.f32.mrf.mxu0
      %v736 = vadd.f32 %v299, %v735
      %v737 = vpop.f32.mrf.mxu0
      %738 = vmatprep.mubr.f32.mxu0 0.0
      %739 = vmatmul.mubr.f32.gmra.mxu0 %v411
      %v740 = vpop.f32.mrf.mxu0
      %v741 = vadd.f32 %v299, %v740
      %v742 = vpop.f32.mrf.mxu0
      %743 = vmatprep.mubr.f32.mxu0 0.0
      %744 = vmatmul.mubr.f32.gmra.mxu0 %v414
      %v745 = vpop.f32.mrf.mxu0
      %v746 = vadd.f32 %v299, %v745
      %v747 = vpop.f32.mrf.mxu0
      %748 = vmatprep.mubr.f32.mxu0 0.0
      %749 = vmatmul.mubr.f32.gmra.mxu0 %v417
      %v750 = vpop.f32.mrf.mxu0
      %v751 = vadd.f32 %v299, %v750
      %v752 = vpop.f32.mrf.mxu0
      %753 = vmatprep.mubr.f32.mxu0 0.0
      %754 = vmatmul.mubr.f32.gmra.mxu0 %v420
      %v755 = vpop.f32.mrf.mxu0
      %v756 = vadd.f32 %v299, %v755
      %v757 = vpop.f32.mrf.mxu0
      %758 = vmatprep.mubr.f32.mxu0 0.0
      %759 = vmatmul.mubr.f32.gmra.mxu0 %v423
      %v760 = vpop.f32.mrf.mxu0
      %v761 = vadd.f32 %v299, %v760
      %v762 = vpop.f32.mrf.mxu0
      %763 = vmatprep.mubr.f32.mxu0 0.0
      %764 = vmatmul.mubr.f32.gmra.mxu0 %v426
      %v765 = vpop.f32.mrf.mxu0
      %v766 = vadd.f32 %v299, %v765
      %v767 = vpop.f32.mrf.mxu0
      %768 = vmatprep.mubr.f32.mxu0 0.0
      %769 = vmatmul.mubr.f32.gmra.mxu0 %v429
      %v770 = vpop.f32.mrf.mxu0
      %v771 = vadd.f32 %v299, %v770
      %v772 = vpop.f32.mrf.mxu0
      %773 = vmatprep.mubr.f32.mxu0 0.0
      %774 = vmatmul.mubr.f32.gmra.mxu0 %v432
      %v775 = vpop.f32.mrf.mxu0
      %v776 = vadd.f32 %v299, %v775
      %v777 = vpop.f32.mrf.mxu0
      %778 = vmatprep.mubr.f32.mxu0 0.0
      %779 = vmatmul.mubr.f32.gmra.mxu0 %v435
      %v780 = vpop.f32.mrf.mxu0
      %v781 = vadd.f32 %v299, %v780
      %v782 = vpop.f32.mrf.mxu0
      %783 = vmatprep.mubr.f32.mxu0 0.0
      %784 = vmatmul.mubr.f32.gmra.mxu0 %v438
      %v785 = vpop.f32.mrf.mxu0
      %v786 = vadd.f32 %v299, %v785
      %v787 = vpop.f32.mrf.mxu0
      %788 = vmatprep.mubr.f32.mxu0 0.0
      %789 = vmatmul.mubr.f32.gmra.mxu0 %v441
      %v790 = vpop.f32.mrf.mxu0
      %v791 = vadd.f32 %v299, %v790
      %v792 = vpop.f32.mrf.mxu0
      %793 = vmatprep.mubr.f32.mxu0 0.0
      %794 = vmatmul.mubr.f32.gmra.mxu0 %v444
      %v795 = vpop.f32.mrf.mxu0
      %v796 = vadd.f32 %v299, %v795
      %v797 = vpop.f32.mrf.mxu0
      %798 = vmatprep.mubr.f32.mxu0 0.0
      %799 = vmatmul.mubr.f32.gmra.mxu0 %v447
      %v800 = vpop.f32.mrf.mxu0
      %v801 = vadd.f32 %v299, %v800
      %v802 = vpop.f32.mrf.mxu0
      %803 = vmatprep.mubr.f32.mxu0 0.0
      %804 = vmatmul.mubr.f32.gmra.mxu0 %v450
      %v805 = vpop.f32.mrf.mxu0
      %v806 = vadd.f32 %v299, %v805
      %v807 = vpop.f32.mrf.mxu0
      %808 = vmatprep.mubr.f32.mxu0 0.0
      %809 = vmatmul.mubr.f32.gmra.mxu0 %v453
      %v810 = vpop.f32.mrf.mxu0
      %v811 = vadd.f32 %v299, %v810
      %v812 = vpop.f32.mrf.mxu0
      %813 = vmatprep.mubr.f32.mxu0 0.0
      %814 = vmatmul.mubr.f32.gmra.mxu0 %v456
      %v815 = vpop.f32.mrf.mxu0
      %v816 = vadd.f32 %v299, %v815
      %v817 = vpop.f32.mrf.mxu0
      %818 = vmatprep.mubr.f32.mxu0 0.0
      %819 = vmatmul.mubr.f32.gmra.mxu0 %v459
      %v820 = vpop.f32.mrf.mxu0
      %v821 = vadd.f32 %v299, %v820
      %v822 = vpop.f32.mrf.mxu0
      %823 = vmatprep.mubr.f32.mxu0 0.0
      %824 = vmatmul.mubr.f32.gmra.mxu0 %v462
      %v825 = vpop.f32.mrf.mxu0
      %v826 = vadd.f32 %v299, %v825
      %v827 = vpop.f32.mrf.mxu0
      %828 = vmatprep.mubr.f32.mxu0 0.0
      %829 = vmatmul.mubr.f32.gmra.mxu0 %v465
      %v830 = vpop.f32.mrf.mxu0
      %v831 = vadd.f32 %v299, %v830
      %v832 = vpop.f32.mrf.mxu0
      %833 = vmatprep.mubr.f32.mxu0 0.0
      %834 = vmatmul.mubr.f32.gmra.mxu0 %v468
      %v835 = vpop.f32.mrf.mxu0
      %v836 = vadd.f32 %v299, %v835
      %v837 = vpop.f32.mrf.mxu0
      %838 = vmatprep.mubr.f32.mxu0 0.0
      %839 = vmatmul.mubr.f32.gmra.mxu0 %v471
      %v840 = vpop.f32.mrf.mxu0
      %v841 = vadd.f32 %v299, %v840
      %v842 = vpop.f32.mrf.mxu0
      %843 = vmatprep.mubr.f32.mxu0 0.0
      %844 = vmatmul.mubr.f32.gmra.mxu0 %v474
      %v845 = vpop.f32.mrf.mxu0
      %v846 = vadd.f32 %v299, %v845
      %v847 = vpop.f32.mrf.mxu0
      %848 = vmatprep.mubr.f32.mxu0 0.0
      %849 = vmatmul.mubr.f32.gmra.mxu0 %v477
      %v850 = vpop.f32.mrf.mxu0
      %v851 = vadd.f32 %v299, %v850
      %v852 = vpop.f32.mrf.mxu0
      %853 = vmatprep.mubr.f32.mxu0 0.0
      %854 = vmatmul.mubr.f32.gmra.mxu0 %v480
      %v855 = vpop.f32.mrf.mxu0
      %v856 = vadd.f32 %v299, %v855
      %v857 = vpop.f32.mrf.mxu0
      %858 = vmatprep.mubr.f32.mxu0 0.0
      %859 = vmatmul.mubr.f32.gmra.mxu0 %v483
      %v860 = vpop.f32.mrf.mxu0
      %v861 = vadd.f32 %v299, %v860
      %v862 = vpop.f32.mrf.mxu0
      %863 = vmatprep.mubr.f32.mxu0 0.0
      %864 = vmatmul.mubr.f32.gmra.mxu0 %v486
      %v865 = vpop.f32.mrf.mxu0
      %v866 = vadd.f32 %v299, %v865
      %v867 = vpop.f32.mrf.mxu0
      %868 = vmatprep.mubr.f32.mxu0 0.0
      %869 = vmatmul.mubr.f32.gmra.mxu0 %v489
      %v870 = vpop.f32.mrf.mxu0
      %v871 = vadd.f32 %v299, %v870
      %v872 = vpop.f32.mrf.mxu0
      %873 = vmatprep.mubr.f32.mxu0 0.0
      %874 = vmatmul.mubr.f32.gmra.mxu0 %v492
      %v875 = vpop.f32.mrf.mxu0
      %v876 = vadd.f32 %v299, %v875
      %v877 = vpop.f32.mrf.mxu0
      %878 = vdwg.mxu0
      %v879 = vmax.f32 %v561, 0.0
      %v880 = vmax.f32 %v566, 0.0
      %v881 = vmax.f32 %v571, 0.0
      %v882 = vmax.f32 %v576, 0.0
      %v883 = vmax.f32 %v581, 0.0
      %v884 = vmax.f32 %v586, 0.0
      %v885 = vmax.f32 %v591, 0.0
      %v886 = vmax.f32 %v596, 0.0
      %v887 = vmax.f32 %v601, 0.0
      %v888 = vmax.f32 %v606, 0.0
      %v889 = vmax.f32 %v611, 0.0
      %v890 = vmax.f32 %v616, 0.0
      %v891 = vmax.f32 %v621, 0.0
      %v892 = vmax.f32 %v626, 0.0
      %v893 = vmax.f32 %v631, 0.0
      %v894 = vmax.f32 %v636, 0.0
      %v895 = vmax.f32 %v641, 0.0
      %v896 = vmax.f32 %v646, 0.0
      %v897 = vmax.f32 %v651, 0.0
      %v898 = vmax.f32 %v656, 0.0
      %v899 = vmax.f32 %v661, 0.0
      %v900 = vmax.f32 %v666, 0.0
      %v901 = vmax.f32 %v671, 0.0
      %v902 = vmax.f32 %v676, 0.0
      %v903 = vmax.f32 %v681, 0.0
      %v904 = vmax.f32 %v686, 0.0
      %v905 = vmax.f32 %v691, 0.0
      %v906 = vmax.f32 %v696, 0.0
      %v907 = vmax.f32 %v701, 0.0
      %v908 = vmax.f32 %v706, 0.0
      %v909 = vmax.f32 %v711, 0.0
      %v910 = vmax.f32 %v716, 0.0
      %v911 = vmax.f32 %v721, 0.0
      %v912 = vmax.f32 %v726, 0.0
      %v913 = vmax.f32 %v731, 0.0
      %v914 = vmax.f32 %v736, 0.0
      %v915 = vmax.f32 %v741, 0.0
      %v916 = vmax.f32 %v746, 0.0
      %v917 = vmax.f32 %v751, 0.0
      %v918 = vmax.f32 %v756, 0.0
      %v919 = vmax.f32 %v761, 0.0
      %v920 = vmax.f32 %v766, 0.0
      %v921 = vmax.f32 %v771, 0.0
      %v922 = vmax.f32 %v776, 0.0
      %v923 = vmax.f32 %v781, 0.0
      %v924 = vmax.f32 %v786, 0.0
      %v925 = vmax.f32 %v791, 0.0
      %v926 = vmax.f32 %v796, 0.0
      %v927 = vmax.f32 %v801, 0.0
      %v928 = vmax.f32 %v806, 0.0
      %v929 = vmax.f32 %v811, 0.0
      %v930 = vmax.f32 %v816, 0.0
      %v931 = vmax.f32 %v821, 0.0
      %v932 = vmax.f32 %v826, 0.0
      %v933 = vmax.f32 %v831, 0.0
      %v934 = vmax.f32 %v836, 0.0
      %v935 = vmax.f32 %v841, 0.0
      %v936 = vmax.f32 %v846, 0.0
      %v937 = vmax.f32 %v851, 0.0
      %v938 = vmax.f32 %v856, 0.0
      %v939 = vmax.f32 %v861, 0.0
      %v940 = vmax.f32 %v866, 0.0
      %v941 = vmax.f32 %v871, 0.0
      %v942 = vmax.f32 %v876, 0.0
      %v943 = vld [vmem:[%s3] sm:$0xff]
      %v944 = vld [vmem:[%s3 + $0x8] sm:$0xff]
      %v945 = vld [vmem:[%s3 + $0x10] sm:$0xf]
      %v946 = vld [vmem:[%s4] sm:$0x1]
      %v948 = vlaneseq
      %v949 = vshrl.u32 %v948, 7
      %v950 = vsub.s32 0, %v949
      %v951 = vrot.slane %v946, %v950
      %vm953 = vcmask 162816
      %v955 = vsel %vm953, %v879, 0
      %v958 = vsel %vm953, %v880, 0
      %v961 = vsel %vm953, %v881, 0
      %v964 = vsel %vm953, %v882, 0
      %v967 = vsel %vm953, %v883, 0
      %v970 = vsel %vm953, %v884, 0
      %v973 = vsel %vm953, %v885, 0
      %v976 = vsel %vm953, %v886, 0
      %v979 = vsel %vm953, %v887, 0
      %v982 = vsel %vm953, %v888, 0
      %v985 = vsel %vm953, %v889, 0
      %v988 = vsel %vm953, %v890, 0
      %v991 = vsel %vm953, %v891, 0
      %v994 = vsel %vm953, %v892, 0
      %v997 = vsel %vm953, %v893, 0
      %v1000 = vsel %vm953, %v894, 0
      %v1003 = vsel %vm953, %v895, 0
      %v1006 = vsel %vm953, %v896, 0
      %v1009 = vsel %vm953, %v897, 0
      %v1012 = vsel %vm953, %v898, 0
      %v1015 = vsel %vm953, %v899, 0
      %v1018 = vsel %vm953, %v900, 0
      %v1021 = vsel %vm953, %v901, 0
      %v1024 = vsel %vm953, %v902, 0
      %v1027 = vsel %vm953, %v903, 0
      %v1030 = vsel %vm953, %v904, 0
      %v1033 = vsel %vm953, %v905, 0
      %v1036 = vsel %vm953, %v906, 0
      %v1039 = vsel %vm953, %v907, 0
      %v1042 = vsel %vm953, %v908, 0
      %v1045 = vsel %vm953, %v909, 0
      %v1048 = vsel %vm953, %v910, 0
      %v1051 = vsel %vm953, %v911, 0
      %v1054 = vsel %vm953, %v912, 0
      %v1057 = vsel %vm953, %v913, 0
      %v1060 = vsel %vm953, %v914, 0
      %v1063 = vsel %vm953, %v915, 0
      %v1066 = vsel %vm953, %v916, 0
      %v1069 = vsel %vm953, %v917, 0
      %v1072 = vsel %vm953, %v918, 0
      %v1075 = vsel %vm953, %v919, 0
      %v1078 = vsel %vm953, %v920, 0
      %v1081 = vsel %vm953, %v921, 0
      %v1084 = vsel %vm953, %v922, 0
      %v1087 = vsel %vm953, %v923, 0
      %v1090 = vsel %vm953, %v924, 0
      %v1093 = vsel %vm953, %v925, 0
      %v1096 = vsel %vm953, %v926, 0
      %v1099 = vsel %vm953, %v927, 0
      %v1102 = vsel %vm953, %v928, 0
      %v1105 = vsel %vm953, %v929, 0
      %v1108 = vsel %vm953, %v930, 0
      %v1111 = vsel %vm953, %v931, 0
      %v1114 = vsel %vm953, %v932, 0
      %v1117 = vsel %vm953, %v933, 0
      %v1120 = vsel %vm953, %v934, 0
      %v1123 = vsel %vm953, %v935, 0
      %v1126 = vsel %vm953, %v936, 0
      %v1129 = vsel %vm953, %v937, 0
      %v1132 = vsel %vm953, %v938, 0
      %v1135 = vsel %vm953, %v939, 0
      %v1138 = vsel %vm953, %v940, 0
      %v1141 = vsel %vm953, %v941, 0
      %v1144 = vsel %vm953, %v942, 0
      %vm1146 = vcmask 1043456
      %v1148 = vsel %vm1146, %v945, 0
      %1150 = vmatprep.subr.mxu0 0.0
      %1151 = vmatpush1.msra.mxu0 0.0
      %1152 = vmatprep.subr.mxu0 0.0
      %1153 = vmatpush1.msra.mxu0 0.0
      %1154 = vmatprep.subr.mxu0 0.0
      %1155 = vmatpush1.msra.mxu0 0.0
      %1156 = vmatprep.subr.mxu0 0.0
      %1157 = vmatpush1.msra.mxu0 0.0
      %1158 = vmatprep.subr.mxu0 0.0
      %1159 = vmatpush1.msra.mxu0 0.0
      %1160 = vmatprep.subr.mxu0 0.0
      %1161 = vmatpush1.msra.mxu0 0.0
      %1162 = vmatprep.subr.mxu0 0.0
      %1163 = vmatpush1.msra.mxu0 0.0
      %1164 = vmatprep.subr.mxu0 0.0
      %1165 = vmatpush1.msra.mxu0 0.0
      %1166 = vmatprep.subr.mxu0 0.0
      %1167 = vmatpush1.msra.mxu0 0.0
      %1168 = vmatprep.subr.mxu0 0.0
      %1169 = vmatpush1.msra.mxu0 0.0
      %1170 = vmatprep.subr.mxu0 0.0
      %1171 = vmatpush1.msra.mxu0 0.0
      %1172 = vmatprep.subr.mxu0 0.0
      %1173 = vmatpush1.msra.mxu0 0.0
      %1174 = vmatprep.subr.mxu0 0.0
      %1175 = vmatpush1.msra.mxu0 0.0
      %1176 = vmatprep.subr.mxu0 0.0
      %1177 = vmatpush1.msra.mxu0 %v1148
      %1178 = vmatprep.subr.mxu0 0.0
      %1179 = vmatpush1.msra.mxu0 %v944
      %1180 = vmatprep.subr.mxu0 0.0
      %1181 = vmatpush1.msra.mxu0 %v943
      %1182 = vmatprep.subr.mxu0 0.0
      %1183 = vmatpush2.msra.mxu0 0.0
      %1184 = vmatprep.subr.mxu0 0.0
      %1185 = vmatpush2.msra.mxu0 0.0
      %1186 = vmatprep.subr.mxu0 0.0
      %1187 = vmatpush2.msra.mxu0 0.0
      %1188 = vmatprep.subr.mxu0 0.0
      %1189 = vmatpush2.msra.mxu0 0.0
      %1190 = vmatprep.subr.mxu0 0.0
      %1191 = vmatpush2.msra.mxu0 0.0
      %1192 = vmatprep.subr.mxu0 0.0
      %1193 = vmatpush2.msra.mxu0 0.0
      %1194 = vmatprep.subr.mxu0 0.0
      %1195 = vmatpush2.msra.mxu0 0.0
      %1196 = vmatprep.subr.mxu0 0.0
      %1197 = vmatpush2.msra.mxu0 0.0
      %1198 = vmatprep.subr.mxu0 0.0
      %1199 = vmatpush2.msra.mxu0 0.0
      %1200 = vmatprep.subr.mxu0 0.0
      %1201 = vmatpush2.msra.mxu0 0.0
      %1202 = vmatprep.subr.mxu0 0.0
      %1203 = vmatpush2.msra.mxu0 0.0
      %1204 = vmatprep.subr.mxu0 0.0
      %1205 = vmatpush2.msra.mxu0 0.0
      %1206 = vmatprep.subr.mxu0 0.0
      %1207 = vmatpush2.msra.mxu0 0.0
      %1208 = vmatprep.subr.mxu0 0.0
      %1209 = vmatpush2.msra.mxu0 0.0
      %1210 = vmatprep.subr.mxu0 0.0
      %1211 = vmatpush2.msra.mxu0 0.0
      %1212 = vmatprep.subr.mxu0 0.0
      %1213 = vmatpush2.msra.mxu0 0.0
      %1214 = vmatprep.mubr.f32.mxu0 0.0
      %1215 = vmatmul.mubr.f32.gmra.mxu0 %v955
      %v1216 = vpop.f32.mrf.mxu0
      %v1217 = vadd.f32 %v951, %v1216
      %v1218 = vpop.f32.mrf.mxu0
      %1219 = vmatprep.mubr.f32.mxu0 0.0
      %1220 = vmatmul.mubr.f32.gmra.mxu0 %v958
      %v1221 = vpop.f32.mrf.mxu0
      %v1222 = vadd.f32 %v951, %v1221
      %v1223 = vpop.f32.mrf.mxu0
      %1224 = vmatprep.mubr.f32.mxu0 0.0
      %1225 = vmatmul.mubr.f32.gmra.mxu0 %v961
      %v1226 = vpop.f32.mrf.mxu0
      %v1227 = vadd.f32 %v951, %v1226
      %v1228 = vpop.f32.mrf.mxu0
      %1229 = vmatprep.mubr.f32.mxu0 0.0
      %1230 = vmatmul.mubr.f32.gmra.mxu0 %v964
      %v1231 = vpop.f32.mrf.mxu0
      %v1232 = vadd.f32 %v951, %v1231
      %v1233 = vpop.f32.mrf.mxu0
      %1234 = vmatprep.mubr.f32.mxu0 0.0
      %1235 = vmatmul.mubr.f32.gmra.mxu0 %v967
      %v1236 = vpop.f32.mrf.mxu0
      %v1237 = vadd.f32 %v951, %v1236
      %v1238 = vpop.f32.mrf.mxu0
      %1239 = vmatprep.mubr.f32.mxu0 0.0
      %1240 = vmatmul.mubr.f32.gmra.mxu0 %v970
      %v1241 = vpop.f32.mrf.mxu0
      %v1242 = vadd.f32 %v951, %v1241
      %v1243 = vpop.f32.mrf.mxu0
      %1244 = vmatprep.mubr.f32.mxu0 0.0
      %1245 = vmatmul.mubr.f32.gmra.mxu0 %v973
      %v1246 = vpop.f32.mrf.mxu0
      %v1247 = vadd.f32 %v951, %v1246
      %v1248 = vpop.f32.mrf.mxu0
      %1249 = vmatprep.mubr.f32.mxu0 0.0
      %1250 = vmatmul.mubr.f32.gmra.mxu0 %v976
      %v1251 = vpop.f32.mrf.mxu0
      %v1252 = vadd.f32 %v951, %v1251
      %v1253 = vpop.f32.mrf.mxu0
      %1254 = vmatprep.mubr.f32.mxu0 0.0
      %1255 = vmatmul.mubr.f32.gmra.mxu0 %v979
      %v1256 = vpop.f32.mrf.mxu0
      %v1257 = vadd.f32 %v951, %v1256
      %v1258 = vpop.f32.mrf.mxu0
      %1259 = vmatprep.mubr.f32.mxu0 0.0
      %1260 = vmatmul.mubr.f32.gmra.mxu0 %v982
      %v1261 = vpop.f32.mrf.mxu0
      %v1262 = vadd.f32 %v951, %v1261
      %v1263 = vpop.f32.mrf.mxu0
      %1264 = vmatprep.mubr.f32.mxu0 0.0
      %1265 = vmatmul.mubr.f32.gmra.mxu0 %v985
      %v1266 = vpop.f32.mrf.mxu0
      %v1267 = vadd.f32 %v951, %v1266
      %v1268 = vpop.f32.mrf.mxu0
      %1269 = vmatprep.mubr.f32.mxu0 0.0
      %1270 = vmatmul.mubr.f32.gmra.mxu0 %v988
      %v1271 = vpop.f32.mrf.mxu0
      %v1272 = vadd.f32 %v951, %v1271
      %v1273 = vpop.f32.mrf.mxu0
      %1274 = vmatprep.mubr.f32.mxu0 0.0
      %1275 = vmatmul.mubr.f32.gmra.mxu0 %v991
      %v1276 = vpop.f32.mrf.mxu0
      %v1277 = vadd.f32 %v951, %v1276
      %v1278 = vpop.f32.mrf.mxu0
      %1279 = vmatprep.mubr.f32.mxu0 0.0
      %1280 = vmatmul.mubr.f32.gmra.mxu0 %v994
      %v1281 = vpop.f32.mrf.mxu0
      %v1282 = vadd.f32 %v951, %v1281
      %v1283 = vpop.f32.mrf.mxu0
      %1284 = vmatprep.mubr.f32.mxu0 0.0
      %1285 = vmatmul.mubr.f32.gmra.mxu0 %v997
      %v1286 = vpop.f32.mrf.mxu0
      %v1287 = vadd.f32 %v951, %v1286
      %v1288 = vpop.f32.mrf.mxu0
      %1289 = vmatprep.mubr.f32.mxu0 0.0
      %1290 = vmatmul.mubr.f32.gmra.mxu0 %v1000
      %v1291 = vpop.f32.mrf.mxu0
      %v1292 = vadd.f32 %v951, %v1291
      %v1293 = vpop.f32.mrf.mxu0
      %1294 = vmatprep.mubr.f32.mxu0 0.0
      %1295 = vmatmul.mubr.f32.gmra.mxu0 %v1003
      %v1296 = vpop.f32.mrf.mxu0
      %v1297 = vadd.f32 %v951, %v1296
      %v1298 = vpop.f32.mrf.mxu0
      %1299 = vmatprep.mubr.f32.mxu0 0.0
      %1300 = vmatmul.mubr.f32.gmra.mxu0 %v1006
      %v1301 = vpop.f32.mrf.mxu0
      %v1302 = vadd.f32 %v951, %v1301
      %v1303 = vpop.f32.mrf.mxu0
      %1304 = vmatprep.mubr.f32.mxu0 0.0
      %1305 = vmatmul.mubr.f32.gmra.mxu0 %v1009
      %v1306 = vpop.f32.mrf.mxu0
      %v1307 = vadd.f32 %v951, %v1306
      %v1308 = vpop.f32.mrf.mxu0
      %1309 = vmatprep.mubr.f32.mxu0 0.0
      %1310 = vmatmul.mubr.f32.gmra.mxu0 %v1012
      %v1311 = vpop.f32.mrf.mxu0
      %v1312 = vadd.f32 %v951, %v1311
      %v1313 = vpop.f32.mrf.mxu0
      %1314 = vmatprep.mubr.f32.mxu0 0.0
      %1315 = vmatmul.mubr.f32.gmra.mxu0 %v1015
      %v1316 = vpop.f32.mrf.mxu0
      %v1317 = vadd.f32 %v951, %v1316
      %v1318 = vpop.f32.mrf.mxu0
      %1319 = vmatprep.mubr.f32.mxu0 0.0
      %1320 = vmatmul.mubr.f32.gmra.mxu0 %v1018
      %v1321 = vpop.f32.mrf.mxu0
      %v1322 = vadd.f32 %v951, %v1321
      %v1323 = vpop.f32.mrf.mxu0
      %1324 = vmatprep.mubr.f32.mxu0 0.0
      %1325 = vmatmul.mubr.f32.gmra.mxu0 %v1021
      %v1326 = vpop.f32.mrf.mxu0
      %v1327 = vadd.f32 %v951, %v1326
      %v1328 = vpop.f32.mrf.mxu0
      %1329 = vmatprep.mubr.f32.mxu0 0.0
      %1330 = vmatmul.mubr.f32.gmra.mxu0 %v1024
      %v1331 = vpop.f32.mrf.mxu0
      %v1332 = vadd.f32 %v951, %v1331
      %v1333 = vpop.f32.mrf.mxu0
      %1334 = vmatprep.mubr.f32.mxu0 0.0
      %1335 = vmatmul.mubr.f32.gmra.mxu0 %v1027
      %v1336 = vpop.f32.mrf.mxu0
      %v1337 = vadd.f32 %v951, %v1336
      %v1338 = vpop.f32.mrf.mxu0
      %1339 = vmatprep.mubr.f32.mxu0 0.0
      %1340 = vmatmul.mubr.f32.gmra.mxu0 %v1030
      %v1341 = vpop.f32.mrf.mxu0
      %v1342 = vadd.f32 %v951, %v1341
      %v1343 = vpop.f32.mrf.mxu0
      %1344 = vmatprep.mubr.f32.mxu0 0.0
      %1345 = vmatmul.mubr.f32.gmra.mxu0 %v1033
      %v1346 = vpop.f32.mrf.mxu0
      %v1347 = vadd.f32 %v951, %v1346
      %v1348 = vpop.f32.mrf.mxu0
      %1349 = vmatprep.mubr.f32.mxu0 0.0
      %1350 = vmatmul.mubr.f32.gmra.mxu0 %v1036
      %v1351 = vpop.f32.mrf.mxu0
      %v1352 = vadd.f32 %v951, %v1351
      %v1353 = vpop.f32.mrf.mxu0
      %1354 = vmatprep.mubr.f32.mxu0 0.0
      %1355 = vmatmul.mubr.f32.gmra.mxu0 %v1039
      %v1356 = vpop.f32.mrf.mxu0
      %v1357 = vadd.f32 %v951, %v1356
      %v1358 = vpop.f32.mrf.mxu0
      %1359 = vmatprep.mubr.f32.mxu0 0.0
      %1360 = vmatmul.mubr.f32.gmra.mxu0 %v1042
      %v1361 = vpop.f32.mrf.mxu0
      %v1362 = vadd.f32 %v951, %v1361
      %v1363 = vpop.f32.mrf.mxu0
      %1364 = vmatprep.mubr.f32.mxu0 0.0
      %1365 = vmatmul.mubr.f32.gmra.mxu0 %v1045
      %v1366 = vpop.f32.mrf.mxu0
      %v1367 = vadd.f32 %v951, %v1366
      %v1368 = vpop.f32.mrf.mxu0
      %1369 = vmatprep.mubr.f32.mxu0 0.0
      %1370 = vmatmul.mubr.f32.gmra.mxu0 %v1048
      %v1371 = vpop.f32.mrf.mxu0
      %v1372 = vadd.f32 %v951, %v1371
      %v1373 = vpop.f32.mrf.mxu0
      %1374 = vmatprep.mubr.f32.mxu0 0.0
      %1375 = vmatmul.mubr.f32.gmra.mxu0 %v1051
      %v1376 = vpop.f32.mrf.mxu0
      %v1377 = vadd.f32 %v951, %v1376
      %v1378 = vpop.f32.mrf.mxu0
      %1379 = vmatprep.mubr.f32.mxu0 0.0
      %1380 = vmatmul.mubr.f32.gmra.mxu0 %v1054
      %v1381 = vpop.f32.mrf.mxu0
      %v1382 = vadd.f32 %v951, %v1381
      %v1383 = vpop.f32.mrf.mxu0
      %1384 = vmatprep.mubr.f32.mxu0 0.0
      %1385 = vmatmul.mubr.f32.gmra.mxu0 %v1057
      %v1386 = vpop.f32.mrf.mxu0
      %v1387 = vadd.f32 %v951, %v1386
      %v1388 = vpop.f32.mrf.mxu0
      %1389 = vmatprep.mubr.f32.mxu0 0.0
      %1390 = vmatmul.mubr.f32.gmra.mxu0 %v1060
      %v1391 = vpop.f32.mrf.mxu0
      %v1392 = vadd.f32 %v951, %v1391
      %v1393 = vpop.f32.mrf.mxu0
      %1394 = vmatprep.mubr.f32.mxu0 0.0
      %1395 = vmatmul.mubr.f32.gmra.mxu0 %v1063
      %v1396 = vpop.f32.mrf.mxu0
      %v1397 = vadd.f32 %v951, %v1396
      %v1398 = vpop.f32.mrf.mxu0
      %1399 = vmatprep.mubr.f32.mxu0 0.0
      %1400 = vmatmul.mubr.f32.gmra.mxu0 %v1066
      %v1401 = vpop.f32.mrf.mxu0
      %v1402 = vadd.f32 %v951, %v1401
      %v1403 = vpop.f32.mrf.mxu0
      %1404 = vmatprep.mubr.f32.mxu0 0.0
      %1405 = vmatmul.mubr.f32.gmra.mxu0 %v1069
      %v1406 = vpop.f32.mrf.mxu0
      %v1407 = vadd.f32 %v951, %v1406
      %v1408 = vpop.f32.mrf.mxu0
      %1409 = vmatprep.mubr.f32.mxu0 0.0
      %1410 = vmatmul.mubr.f32.gmra.mxu0 %v1072
      %v1411 = vpop.f32.mrf.mxu0
      %v1412 = vadd.f32 %v951, %v1411
      %v1413 = vpop.f32.mrf.mxu0
      %1414 = vmatprep.mubr.f32.mxu0 0.0
      %1415 = vmatmul.mubr.f32.gmra.mxu0 %v1075
      %v1416 = vpop.f32.mrf.mxu0
      %v1417 = vadd.f32 %v951, %v1416
      %v1418 = vpop.f32.mrf.mxu0
      %1419 = vmatprep.mubr.f32.mxu0 0.0
      %1420 = vmatmul.mubr.f32.gmra.mxu0 %v1078
      %v1421 = vpop.f32.mrf.mxu0
      %v1422 = vadd.f32 %v951, %v1421
      %v1423 = vpop.f32.mrf.mxu0
      %1424 = vmatprep.mubr.f32.mxu0 0.0
      %1425 = vmatmul.mubr.f32.gmra.mxu0 %v1081
      %v1426 = vpop.f32.mrf.mxu0
      %v1427 = vadd.f32 %v951, %v1426
      %v1428 = vpop.f32.mrf.mxu0
      %1429 = vmatprep.mubr.f32.mxu0 0.0
      %1430 = vmatmul.mubr.f32.gmra.mxu0 %v1084
      %v1431 = vpop.f32.mrf.mxu0
      %v1432 = vadd.f32 %v951, %v1431
      %v1433 = vpop.f32.mrf.mxu0
      %1434 = vmatprep.mubr.f32.mxu0 0.0
      %1435 = vmatmul.mubr.f32.gmra.mxu0 %v1087
      %v1436 = vpop.f32.mrf.mxu0
      %v1437 = vadd.f32 %v951, %v1436
      %v1438 = vpop.f32.mrf.mxu0
      %1439 = vmatprep.mubr.f32.mxu0 0.0
      %1440 = vmatmul.mubr.f32.gmra.mxu0 %v1090
      %v1441 = vpop.f32.mrf.mxu0
      %v1442 = vadd.f32 %v951, %v1441
      %v1443 = vpop.f32.mrf.mxu0
      %1444 = vmatprep.mubr.f32.mxu0 0.0
      %1445 = vmatmul.mubr.f32.gmra.mxu0 %v1093
      %v1446 = vpop.f32.mrf.mxu0
      %v1447 = vadd.f32 %v951, %v1446
      %v1448 = vpop.f32.mrf.mxu0
      %1449 = vmatprep.mubr.f32.mxu0 0.0
      %1450 = vmatmul.mubr.f32.gmra.mxu0 %v1096
      %v1451 = vpop.f32.mrf.mxu0
      %v1452 = vadd.f32 %v951, %v1451
      %v1453 = vpop.f32.mrf.mxu0
      %1454 = vmatprep.mubr.f32.mxu0 0.0
      %1455 = vmatmul.mubr.f32.gmra.mxu0 %v1099
      %v1456 = vpop.f32.mrf.mxu0
      %v1457 = vadd.f32 %v951, %v1456
      %v1458 = vpop.f32.mrf.mxu0
      %1459 = vmatprep.mubr.f32.mxu0 0.0
      %1460 = vmatmul.mubr.f32.gmra.mxu0 %v1102
      %v1461 = vpop.f32.mrf.mxu0
      %v1462 = vadd.f32 %v951, %v1461
      %v1463 = vpop.f32.mrf.mxu0
      %1464 = vmatprep.mubr.f32.mxu0 0.0
      %1465 = vmatmul.mubr.f32.gmra.mxu0 %v1105
      %v1466 = vpop.f32.mrf.mxu0
      %v1467 = vadd.f32 %v951, %v1466
      %v1468 = vpop.f32.mrf.mxu0
      %1469 = vmatprep.mubr.f32.mxu0 0.0
      %1470 = vmatmul.mubr.f32.gmra.mxu0 %v1108
      %v1471 = vpop.f32.mrf.mxu0
      %v1472 = vadd.f32 %v951, %v1471
      %v1473 = vpop.f32.mrf.mxu0
      %1474 = vmatprep.mubr.f32.mxu0 0.0
      %1475 = vmatmul.mubr.f32.gmra.mxu0 %v1111
      %v1476 = vpop.f32.mrf.mxu0
      %v1477 = vadd.f32 %v951, %v1476
      %v1478 = vpop.f32.mrf.mxu0
      %1479 = vmatprep.mubr.f32.mxu0 0.0
      %1480 = vmatmul.mubr.f32.gmra.mxu0 %v1114
      %v1481 = vpop.f32.mrf.mxu0
      %v1482 = vadd.f32 %v951, %v1481
      %v1483 = vpop.f32.mrf.mxu0
      %1484 = vmatprep.mubr.f32.mxu0 0.0
      %1485 = vmatmul.mubr.f32.gmra.mxu0 %v1117
      %v1486 = vpop.f32.mrf.mxu0
      %v1487 = vadd.f32 %v951, %v1486
      %v1488 = vpop.f32.mrf.mxu0
      %1489 = vmatprep.mubr.f32.mxu0 0.0
      %1490 = vmatmul.mubr.f32.gmra.mxu0 %v1120
      %v1491 = vpop.f32.mrf.mxu0
      %v1492 = vadd.f32 %v951, %v1491
      %v1493 = vpop.f32.mrf.mxu0
      %1494 = vmatprep.mubr.f32.mxu0 0.0
      %1495 = vmatmul.mubr.f32.gmra.mxu0 %v1123
      %v1496 = vpop.f32.mrf.mxu0
      %v1497 = vadd.f32 %v951, %v1496
      %v1498 = vpop.f32.mrf.mxu0
      %1499 = vmatprep.mubr.f32.mxu0 0.0
      %1500 = vmatmul.mubr.f32.gmra.mxu0 %v1126
      %v1501 = vpop.f32.mrf.mxu0
      %v1502 = vadd.f32 %v951, %v1501
      %v1503 = vpop.f32.mrf.mxu0
      %1504 = vmatprep.mubr.f32.mxu0 0.0
      %1505 = vmatmul.mubr.f32.gmra.mxu0 %v1129
      %v1506 = vpop.f32.mrf.mxu0
      %v1507 = vadd.f32 %v951, %v1506
      %v1508 = vpop.f32.mrf.mxu0
      %1509 = vmatprep.mubr.f32.mxu0 0.0
      %1510 = vmatmul.mubr.f32.gmra.mxu0 %v1132
      %v1511 = vpop.f32.mrf.mxu0
      %v1512 = vadd.f32 %v951, %v1511
      %v1513 = vpop.f32.mrf.mxu0
      %1514 = vmatprep.mubr.f32.mxu0 0.0
      %1515 = vmatmul.mubr.f32.gmra.mxu0 %v1135
      %v1516 = vpop.f32.mrf.mxu0
      %v1517 = vadd.f32 %v951, %v1516
      %v1518 = vpop.f32.mrf.mxu0
      %1519 = vmatprep.mubr.f32.mxu0 0.0
      %1520 = vmatmul.mubr.f32.gmra.mxu0 %v1138
      %v1521 = vpop.f32.mrf.mxu0
      %v1522 = vadd.f32 %v951, %v1521
      %v1523 = vpop.f32.mrf.mxu0
      %1524 = vmatprep.mubr.f32.mxu0 0.0
      %1525 = vmatmul.mubr.f32.gmra.mxu0 %v1141
      %v1526 = vpop.f32.mrf.mxu0
      %v1527 = vadd.f32 %v951, %v1526
      %v1528 = vpop.f32.mrf.mxu0
      %1529 = vmatprep.mubr.f32.mxu0 0.0
      %1530 = vmatmul.mubr.f32.gmra.mxu0 %v1144
      %v1531 = vpop.f32.mrf.mxu0
      %v1532 = vadd.f32 %v951, %v1531
      %v1533 = vpop.f32.mrf.mxu0
      %1534 = vdwg.mxu0
      %v1535 = vmax.f32 %v1217, 0.0
      %v1536 = vmax.f32 %v1222, 0.0
      %v1537 = vmax.f32 %v1227, 0.0
      %v1538 = vmax.f32 %v1232, 0.0
      %v1539 = vmax.f32 %v1237, 0.0
      %v1540 = vmax.f32 %v1242, 0.0
      %v1541 = vmax.f32 %v1247, 0.0
      %v1542 = vmax.f32 %v1252, 0.0
      %v1543 = vmax.f32 %v1257, 0.0
      %v1544 = vmax.f32 %v1262, 0.0
      %v1545 = vmax.f32 %v1267, 0.0
      %v1546 = vmax.f32 %v1272, 0.0
      %v1547 = vmax.f32 %v1277, 0.0
      %v1548 = vmax.f32 %v1282, 0.0
      %v1549 = vmax.f32 %v1287, 0.0
      %v1550 = vmax.f32 %v1292, 0.0
      %v1551 = vmax.f32 %v1297, 0.0
      %v1552 = vmax.f32 %v1302, 0.0
      %v1553 = vmax.f32 %v1307, 0.0
      %v1554 = vmax.f32 %v1312, 0.0
      %v1555 = vmax.f32 %v1317, 0.0
      %v1556 = vmax.f32 %v1322, 0.0
      %v1557 = vmax.f32 %v1327, 0.0
      %v1558 = vmax.f32 %v1332, 0.0
      %v1559 = vmax.f32 %v1337, 0.0
      %v1560 = vmax.f32 %v1342, 0.0
      %v1561 = vmax.f32 %v1347, 0.0
      %v1562 = vmax.f32 %v1352, 0.0
      %v1563 = vmax.f32 %v1357, 0.0
      %v1564 = vmax.f32 %v1362, 0.0
      %v1565 = vmax.f32 %v1367, 0.0
      %v1566 = vmax.f32 %v1372, 0.0
      %v1567 = vmax.f32 %v1377, 0.0
      %v1568 = vmax.f32 %v1382, 0.0
      %v1569 = vmax.f32 %v1387, 0.0
      %v1570 = vmax.f32 %v1392, 0.0
      %v1571 = vmax.f32 %v1397, 0.0
      %v1572 = vmax.f32 %v1402, 0.0
      %v1573 = vmax.f32 %v1407, 0.0
      %v1574 = vmax.f32 %v1412, 0.0
      %v1575 = vmax.f32 %v1417, 0.0
      %v1576 = vmax.f32 %v1422, 0.0
      %v1577 = vmax.f32 %v1427, 0.0
      %v1578 = vmax.f32 %v1432, 0.0
      %v1579 = vmax.f32 %v1437, 0.0
      %v1580 = vmax.f32 %v1442, 0.0
      %v1581 = vmax.f32 %v1447, 0.0
      %v1582 = vmax.f32 %v1452, 0.0
      %v1583 = vmax.f32 %v1457, 0.0
      %v1584 = vmax.f32 %v1462, 0.0
      %v1585 = vmax.f32 %v1467, 0.0
      %v1586 = vmax.f32 %v1472, 0.0
      %v1587 = vmax.f32 %v1477, 0.0
      %v1588 = vmax.f32 %v1482, 0.0
      %v1589 = vmax.f32 %v1487, 0.0
      %v1590 = vmax.f32 %v1492, 0.0
      %v1591 = vmax.f32 %v1497, 0.0
      %v1592 = vmax.f32 %v1502, 0.0
      %v1593 = vmax.f32 %v1507, 0.0
      %v1594 = vmax.f32 %v1512, 0.0
      %v1595 = vmax.f32 %v1517, 0.0
      %v1596 = vmax.f32 %v1522, 0.0
      %v1597 = vmax.f32 %v1527, 0.0
      %v1598 = vmax.f32 %v1532, 0.0
      %vm1599 = vcmask 261120
      %1600 = vst.msk [vmem:[%s226] sm:$0xff] %vm1599, %v1535
      %1601 = vst.msk [vmem:[%s226 + $0x8] sm:$0xff] %vm1599, %v1536
      %1602 = vst.msk [vmem:[%s226 + $0x10] sm:$0xff] %vm1599, %v1537
      %1603 = vst.msk [vmem:[%s226 + $0x18] sm:$0xff] %vm1599, %v1538
      %1604 = vst.msk [vmem:[%s226 + $0x20] sm:$0xff] %vm1599, %v1539
      %1605 = vst.msk [vmem:[%s226 + $0x28] sm:$0xff] %vm1599, %v1540
      %1606 = vst.msk [vmem:[%s226 + $0x30] sm:$0xff] %vm1599, %v1541
      %1607 = vst.msk [vmem:[%s226 + $0x38] sm:$0xff] %vm1599, %v1542
      %1608 = vst.msk [vmem:[%s226 + $0x40] sm:$0xff] %vm1599, %v1543
      %1609 = vst.msk [vmem:[%s226 + $0x48] sm:$0xff] %vm1599, %v1544
      %1610 = vst.msk [vmem:[%s226 + $0x50] sm:$0xff] %vm1599, %v1545
      %1611 = vst.msk [vmem:[%s226 + $0x58] sm:$0xff] %vm1599, %v1546
      %1612 = vst.msk [vmem:[%s226 + $0x60] sm:$0xff] %vm1599, %v1547
      %1613 = vst.msk [vmem:[%s226 + $0x68] sm:$0xff] %vm1599, %v1548
      %1614 = vst.msk [vmem:[%s226 + $0x70] sm:$0xff] %vm1599, %v1549
      %1615 = vst.msk [vmem:[%s226 + $0x78] sm:$0xff] %vm1599, %v1550
      %1616 = vst.msk [vmem:[%s226 + $0x80] sm:$0xff] %vm1599, %v1551
      %1617 = vst.msk [vmem:[%s226 + $0x88] sm:$0xff] %vm1599, %v1552
      %1618 = vst.msk [vmem:[%s226 + $0x90] sm:$0xff] %vm1599, %v1553
      %1619 = vst.msk [vmem:[%s226 + $0x98] sm:$0xff] %vm1599, %v1554
      %1620 = vst.msk [vmem:[%s226 + $0xa0] sm:$0xff] %vm1599, %v1555
      %1621 = vst.msk [vmem:[%s226 + $0xa8] sm:$0xff] %vm1599, %v1556
      %1622 = vst.msk [vmem:[%s226 + $0xb0] sm:$0xff] %vm1599, %v1557
      %1623 = vst.msk [vmem:[%s226 + $0xb8] sm:$0xff] %vm1599, %v1558
      %1624 = vst.msk [vmem:[%s226 + $0xc0] sm:$0xff] %vm1599, %v1559
      %1625 = vst.msk [vmem:[%s226 + $0xc8] sm:$0xff] %vm1599, %v1560
      %1626 = vst.msk [vmem:[%s226 + $0xd0] sm:$0xff] %vm1599, %v1561
      %1627 = vst.msk [vmem:[%s226 + $0xd8] sm:$0xff] %vm1599, %v1562
      %1628 = vst.msk [vmem:[%s226 + $0xe0] sm:$0xff] %vm1599, %v1563
      %1629 = vst.msk [vmem:[%s226 + $0xe8] sm:$0xff] %vm1599, %v1564
      %1630 = vst.msk [vmem:[%s226 + $0xf0] sm:$0xff] %vm1599, %v1565
      %1631 = vst.msk [vmem:[%s226 + $0xf8] sm:$0xff] %vm1599, %v1566
      %1632 = vst.msk [vmem:[%s226 + $0x100] sm:$0xff] %vm1599, %v1567
      %1633 = vst.msk [vmem:[%s226 + $0x108] sm:$0xff] %vm1599, %v1568
      %1634 = vst.msk [vmem:[%s226 + $0x110] sm:$0xff] %vm1599, %v1569
      %1635 = vst.msk [vmem:[%s226 + $0x118] sm:$0xff] %vm1599, %v1570
      %1636 = vst.msk [vmem:[%s226 + $0x120] sm:$0xff] %vm1599, %v1571
      %1637 = vst.msk [vmem:[%s226 + $0x128] sm:$0xff] %vm1599, %v1572
      %1638 = vst.msk [vmem:[%s226 + $0x130] sm:$0xff] %vm1599, %v1573
      %1639 = vst.msk [vmem:[%s226 + $0x138] sm:$0xff] %vm1599, %v1574
      %1640 = vst.msk [vmem:[%s226 + $0x140] sm:$0xff] %vm1599, %v1575
      %1641 = vst.msk [vmem:[%s226 + $0x148] sm:$0xff] %vm1599, %v1576
      %1642 = vst.msk [vmem:[%s226 + $0x150] sm:$0xff] %vm1599, %v1577
      %1643 = vst.msk [vmem:[%s226 + $0x158] sm:$0xff] %vm1599, %v1578
      %1644 = vst.msk [vmem:[%s226 + $0x160] sm:$0xff] %vm1599, %v1579
      %1645 = vst.msk [vmem:[%s226 + $0x168] sm:$0xff] %vm1599, %v1580
      %1646 = vst.msk [vmem:[%s226 + $0x170] sm:$0xff] %vm1599, %v1581
      %1647 = vst.msk [vmem:[%s226 + $0x178] sm:$0xff] %vm1599, %v1582
      %1648 = vst.msk [vmem:[%s226 + $0x180] sm:$0xff] %vm1599, %v1583
      %1649 = vst.msk [vmem:[%s226 + $0x188] sm:$0xff] %vm1599, %v1584
      %1650 = vst.msk [vmem:[%s226 + $0x190] sm:$0xff] %vm1599, %v1585
      %1651 = vst.msk [vmem:[%s226 + $0x198] sm:$0xff] %vm1599, %v1586
      %1652 = vst.msk [vmem:[%s226 + $0x1a0] sm:$0xff] %vm1599, %v1587
      %1653 = vst.msk [vmem:[%s226 + $0x1a8] sm:$0xff] %vm1599, %v1588
      %1654 = vst.msk [vmem:[%s226 + $0x1b0] sm:$0xff] %vm1599, %v1589
      %1655 = vst.msk [vmem:[%s226 + $0x1b8] sm:$0xff] %vm1599, %v1590
      %1656 = vst.msk [vmem:[%s226 + $0x1c0] sm:$0xff] %vm1599, %v1591
      %1657 = vst.msk [vmem:[%s226 + $0x1c8] sm:$0xff] %vm1599, %v1592
      %1658 = vst.msk [vmem:[%s226 + $0x1d0] sm:$0xff] %vm1599, %v1593
      %1659 = vst.msk [vmem:[%s226 + $0x1d8] sm:$0xff] %vm1599, %v1594
      %1660 = vst.msk [vmem:[%s226 + $0x1e0] sm:$0xff] %vm1599, %v1595
      %1661 = vst.msk [vmem:[%s226 + $0x1e8] sm:$0xff] %vm1599, %v1596
      %1662 = vst.msk [vmem:[%s226 + $0x1f0] sm:$0xff] %vm1599, %v1597
      %1663 = vst.msk [vmem:[%s226 + $0x1f8] sm:$0xff] %vm1599, %v1598
      %s1664 = smul.u32 64, %s16
      %p1665 = scmp.lt.s32.totalorder %s1664, 127
      %s1666 = scalar_select %p1665, %s1664, 127
      %s1667 = smul.addr %s1666, 8
      %s1668 = scalar_lea.vmem %s5, %s1667
      // Predicated region
      $region41: #{mlp_forward.1} parent=39 // pred_check
        %p1669 = pneg %p144
      $region42: #{mlp_forward.1} parent=39 // pred_check_branch
        %1671 = sbr.rel (%p1669) target = $region44
      $region43: #{mlp_forward.1} parent=39 // pred_region
        %s1672 = smul.u32 64, %s16
      $region44: #{mlp_forward.1} parent=39 // pred_fallthru
        _
    $region40: #{mlp_forward.1} parent=5 // pred_fallthru
      _
    %p1673 = scmp.le.s32.totalorder 2, %s11
    // Predicated region
    $region45: #{mlp_forward.1} parent=5 // pred_check
      %p1674 = pneg %p1673
    $region46: #{mlp_forward.1} parent=5 // pred_check_branch
      %1676 = sbr.rel (%p1674) target = $region48
    $region47: #{mlp_forward.1} parent=5 // pred_region
      %s1677 = ssub.s32 %s11, 2
      // Predicated region
      $region49: #{mlp_forward.1} parent=47 // pred_check
        %p1678 = pneg %p150
      $region50: #{mlp_forward.1} parent=47 // pred_check_branch
        %1680 = sbr.rel (%p1678) target = $region52
      $region51: #{mlp_forward.1} parent=47 // pred_region
        %s1681 = smul.u32 64, %s17
        %p1682 = scmp.lt.s32.totalorder %s1681, 127
        %s1683 = scalar_select %p1682, %s1681, 127
        %s1684 = smul.addr %s1683, 8
        %s1685 = scalar_lea.vmem %s5, %s1684
      $region52: #{mlp_forward.1} parent=47 // pred_fallthru
        _
    $region48: #{mlp_forward.1} parent=5 // pred_fallthru
      _
  $region6: #{mlp_forward.1} parent=0 // loop_footer
    %s15 = sadd.s32 1, %s11
  $region7: #{mlp_forward.1} parent=0 // loop_footer_branch
    %10 = sbr.rel target = $region3
  $region8: #{mlp_forward.1} parent=0 // loop_exit
    _

</llo_original>
